<compile_context>
chip_gen: v5e
topology: v5e:2x2
jax: 0.10.0
libtpu: 0.0.40
codegen_flags: <defaults>
</compile_context>

<pallas_src>
import functools

import jax
import jax.numpy as jnp
from jax import lax
from jax.experimental import pallas as pl
from jax.experimental.pallas import tpu as pltpu


# ------------------------------ Pallas kernel --------------------------------

def _mha_kernel(d_head, has_mask, *refs):
    """Grid = (batch, head).  Projections at h==0, per-head attention each step,
    head-summed output projection accumulated in VMEM scratch."""
    if has_mask:
        (q_ref, k_ref, v_ref, mask_ref,
         wq_ref, bq_ref, wk_ref, bk_ref, wv_ref, bv_ref, wo_ref, bo_ref,
         out_ref, attn_ref,
         q_scr, k_scr, v_scr, acc_scr) = refs
    else:
        (q_ref, k_ref, v_ref,
         wq_ref, bq_ref, wk_ref, bk_ref, wv_ref, bv_ref, wo_ref, bo_ref,
         out_ref, attn_ref,
         q_scr, k_scr, v_scr, acc_scr) = refs
        mask_ref = None

    h = pl.program_id(1)
    H, Sq, dh = q_scr.shape
    Sk = k_scr.shape[1]
    inv_scale = float(1.0 / (d_head ** 0.5))     # scale = sqrt(d_model / n_heads)

    # ---- once per batch element: fused lane-dense QKV projections ----------
    @pl.when(h == 0)
    def _project():
        xq = q_ref[0].astype(jnp.bfloat16)       # (Sq, D)
        xk = k_ref[0].astype(jnp.bfloat16)       # (Sk, D)
        xv = v_ref[0].astype(jnp.bfloat16)
        q2 = jnp.dot(xq, wq_ref[...], preferred_element_type=jnp.float32) + bq_ref[...]
        k2 = jnp.dot(xk, wk_ref[...], preferred_element_type=jnp.float32) + bk_ref[...]
        v2 = jnp.dot(xv, wv_ref[...], preferred_element_type=jnp.float32) + bv_ref[...]
        q2 = q2 * inv_scale                      # scale q (S,D), not scores (H,Sq,Sk)
        # Split heads into scratch with static lane slices (layout plumbing only).
        for hh in range(H):
            sl = slice(hh * dh, (hh + 1) * dh)
            q_scr[hh] = q2[:, sl].astype(jnp.bfloat16)
            k_scr[hh] = k2[:, sl].astype(jnp.bfloat16)
            v_scr[hh] = v2[:, sl].astype(jnp.bfloat16)
        acc_scr[...] = jnp.zeros_like(acc_scr)

    # ---- per-head attention -------------------------------------------------
    qh = q_scr[h]                                # (Sq, dh) bf16, pre-scaled
    kh = k_scr[h]                                # (Sk, dh) bf16
    vh = v_scr[h]                                # (Sk, dh) bf16

    s = lax.dot_general(qh, kh, (((1,), (1,)), ((), ())),
                        preferred_element_type=jnp.float32)      # (Sq, Sk) f32
    if has_mask:
        s = s + mask_ref[...]                    # additive -1e9 at masked positions
    s_max = jnp.max(s, axis=-1, keepdims=True)
    e = jnp.exp(s - s_max)
    denom = jnp.sum(e, axis=-1, keepdims=True)
    w = e * pl.reciprocal(denom, approx=True)    # EUP slot, not a VPU divide

    attn_ref[0, 0] = w.astype(attn_ref.dtype)    # single full-block store

    oh = jnp.dot(w.astype(jnp.bfloat16), vh,
                 preferred_element_type=jnp.float32)             # (Sq, dh)
    # Head reduction folded into the output projection: accumulate over heads.
    acc_scr[...] += jnp.dot(oh.astype(jnp.bfloat16), wo_ref[...],
                            preferred_element_type=jnp.float32)  # (Sq, D)

    @pl.when(h == pl.num_programs(1) - 1)
    def _finalize():
        out_ref[0] = (acc_scr[...] + bo_ref[...]).astype(out_ref.dtype)


# ------------------------------ wrapper ---------------------------------------

def mha_pallas(Q, K, V, params, n_heads, mask=None, attn_dtype=jnp.float32):
    """Returns (output, attention_weights) like the PyTorch MHA module.

    mask: optional (Sq, Sk) boolean, True = masked position.
    attn_dtype: dtype of the returned attention map (bf16 halves HBM writeback).
    """
    B, Sq, D = Q.shape
    Sk = K.shape[1]
    H = n_heads
    assert D % H == 0
    dh = D // H

    # Weights shipped in bf16 (half the DMA bytes); biases / mask stay f32.
    wq = params["wq"].astype(jnp.bfloat16)
    wk = params["wk"].astype(jnp.bfloat16)
    wv = params["wv"].astype(jnp.bfloat16)
    wo = params["wo"].astype(jnp.bfloat16)
    bq = params["bq"].reshape(1, D).astype(jnp.float32)
    bk = params["bk"].reshape(1, D).astype(jnp.float32)
    bv = params["bv"].reshape(1, D).astype(jnp.float32)
    bo = params["bo"].reshape(1, D).astype(jnp.float32)

    has_mask = mask is not None

    def const(shape):
        zeros = (0,) * len(shape)
        return pl.BlockSpec(shape, lambda b, h, _z=zeros: _z)

    in_specs = [
        pl.BlockSpec((1, Sq, D), lambda b, h: (b, 0, 0)),      # Q
        pl.BlockSpec((1, Sk, D), lambda b, h: (b, 0, 0)),      # K
        pl.BlockSpec((1, Sk, D), lambda b, h: (b, 0, 0)),      # V
    ]
    args = [Q, K, V]
    if has_mask:
        # Additive mask computed once in the wrapper (True -> -1e9; after the
        # max-subtracted softmax, exp underflows to exactly 0).
        mask_add = jnp.where(mask, jnp.float32(-1e9), jnp.float32(0.0))
        in_specs.append(const((Sq, Sk)))
        args.append(mask_add)
    in_specs += [
        const((D, D)), const((1, D)),                          # wq, bq
        const((D, D)), const((1, D)),                          # wk, bk
        const((D, D)), const((1, D)),                          # wv, bv
        pl.BlockSpec((dh, D), lambda b, h: (h, 0)),            # wo: per-head row slab
        const((1, D)),                                         # bo
    ]
    args += [wq, bq, wk, bk, wv, bv, wo, bo]

    out_specs = (
        pl.BlockSpec((1, Sq, D), lambda b, h: (b, 0, 0)),          # out (written at last h)
        pl.BlockSpec((1, 1, Sq, Sk), lambda b, h: (b, h, 0, 0)),   # attn weights per head
    )
    out_shape = (
        jax.ShapeDtypeStruct((B, Sq, D), jnp.float32),
        jax.ShapeDtypeStruct((B, H, Sq, Sk), attn_dtype),
    )
    scratch_shapes = [
        pltpu.VMEM((H, Sq, dh), jnp.bfloat16),   # projected Q (per-head, pre-scaled)
        pltpu.VMEM((H, Sk, dh), jnp.bfloat16),   # projected K
        pltpu.VMEM((H, Sk, dh), jnp.bfloat16),   # projected V
        pltpu.VMEM((Sq, D), jnp.float32),        # output-projection accumulator
    ]

    kernel = functools.partial(_mha_kernel, dh, has_mask)
    return pl.pallas_call(
        kernel,
        grid=(B, H),
        in_specs=in_specs,
        out_specs=out_specs,
        out_shape=out_shape,
        scratch_shapes=scratch_shapes,
        compiler_params=pltpu.CompilerParams(
            # batch elements independent -> megacore; head axis carries scratch.
            dimension_semantics=("parallel", "arbitrary")),
    )(*args)


# ------------------------------ parameters ------------------------------------

def init_params(key, d_model):
    ks = jax.random.split(key, 8)
    def w(k): return 0.02 * jax.random.normal(k, (d_model, d_model), jnp.float32)
    def b(k): return 0.02 * jax.random.normal(k, (d_model,), jnp.float32)
    return {"wq": w(ks[0]), "bq": b(ks[1]),
            "wk": w(ks[2]), "bk": b(ks[3]),
            "wv": w(ks[4]), "bv": b(ks[5]),
            "wo": w(ks[6]), "bo": b(ks[7])}


# ------------------------------ JAX reference ----------------------------------

def mha_reference(Q, K, V, params, n_heads, mask=None):
    B, Sq, D = Q.shape
    H, dh = n_heads, D // n_heads
    q = Q @ params["wq"] + params["bq"]
    k = K @ params["wk"] + params["bk"]
    v = V @ params["wv"] + params["bv"]
    def split(t):
        S = t.shape[1]
        return t.reshape(B, S, H, dh).transpose(0, 2, 1, 3)
    qh, kh, vh = split(q), split(k), split(v)
    s = (qh @ kh.transpose(0, 1, 3, 2)) / jnp.sqrt(jnp.float32(D / n_heads))
    if mask is not None:
        s = jnp.where(mask[None, None], jnp.float32(-1e9), s)
    w = jax.nn.softmax(s, axis=-1)
    a = (w @ vh).transpose(0, 2, 1, 3).reshape(B, Sq, D)
    x = a @ params["wo"] + params["bo"]
    return x, w


# ---------------------------------- main ---------------------------------------

if __name__ == "__main__":
    B, S, d_model, n_heads = 2, 8, 32, 4

    key = jax.random.PRNGKey(0)
    kq, kk, kv, kp = jax.random.split(key, 4)
    params = init_params(kp, d_model)
    Q = jax.random.normal(kq, (B, S, d_model), jnp.float32)
    K = jax.random.normal(kk, (B, S, d_model), jnp.float32)
    V = jax.random.normal(kv, (B, S, d_model), jnp.float32)
    causal = jnp.triu(jnp.ones((S, S), jnp.bool_), k=1)   # True -> masked

    # masked (causal) case
    out, attn = mha_pallas(Q, K, V, params, n_heads, mask=causal)
    out = jax.block_until_ready(out)
    attn = jax.block_until_ready(attn)
    out_ref, attn_ref = mha_reference(Q, K, V, params, n_heads, mask=causal)
    assert out.shape == (B, S, d_model)
    assert attn.shape == (B, n_heads, S, S)
    # bf16 MXU inputs + approx reciprocal -> slightly looser tolerance than pure f32
    assert jnp.allclose(out, out_ref, atol=3e-3, rtol=3e-2), \
        float(jnp.max(jnp.abs(out - out_ref)))
    assert jnp.allclose(attn, attn_ref, atol=3e-3, rtol=3e-2), \
        float(jnp.max(jnp.abs(attn - attn_ref)))

    # mask=None path (mask input and add are compiled out entirely)
    out2, attn2 = mha_pallas(Q, K, V, params, n_heads, mask=None)
    out2 = jax.block_until_ready(out2)
    attn2 = jax.block_until_ready(attn2)
    out2_ref, attn2_ref = mha_reference(Q, K, V, params, n_heads, mask=None)
    assert jnp.allclose(out2, out2_ref, atol=3e-3, rtol=3e-2)
    assert jnp.allclose(attn2, attn2_ref, atol=3e-3, rtol=3e-2)

    print("KERNEL_OK")
</pallas_src>

<mosaic_0001>
module attributes {stable_mosaic.version = 11 : i64} {
  func.func @_mha_kernel(%arg0: i32, %arg1: i32, %arg2: memref<1x8x32xf32, #tpu.memory_space<vmem>>, %arg3: memref<1x8x32xf32, #tpu.memory_space<vmem>>, %arg4: memref<1x8x32xf32, #tpu.memory_space<vmem>>, %arg5: memref<8x8xf32, #tpu.memory_space<vmem>>, %arg6: memref<32x32xbf16, #tpu.memory_space<vmem>>, %arg7: memref<1x32xf32, #tpu.memory_space<vmem>>, %arg8: memref<32x32xbf16, #tpu.memory_space<vmem>>, %arg9: memref<1x32xf32, #tpu.memory_space<vmem>>, %arg10: memref<32x32xbf16, #tpu.memory_space<vmem>>, %arg11: memref<1x32xf32, #tpu.memory_space<vmem>>, %arg12: memref<8x32xbf16, #tpu.memory_space<vmem>>, %arg13: memref<1x32xf32, #tpu.memory_space<vmem>>, %arg14: memref<1x8x32xf32, #tpu.memory_space<vmem>>, %arg15: memref<1x1x8x8xf32, #tpu.memory_space<vmem>>, %arg16: memref<4x8x8xbf16, #tpu.memory_space<vmem>>, %arg17: memref<4x8x8xbf16, #tpu.memory_space<vmem>>, %arg18: memref<4x8x8xbf16, #tpu.memory_space<vmem>>, %arg19: memref<8x32xf32, #tpu.memory_space<vmem>>) attributes {dimension_semantics = [#tpu.dimension_semantics<parallel>, #tpu.dimension_semantics<arbitrary>], iteration_bounds = array<i64: 2, 4>, scalar_prefetch = 0 : i64, scratch_operands = 4 : i64, tpu.core_type = #tpu.core_type<tc>, window_params = [{transform_indices = @transform_0, window_bounds = array<i64: 1, 8, 32>}, {transform_indices = @transform_1, window_bounds = array<i64: 1, 8, 32>}, {transform_indices = @transform_2, window_bounds = array<i64: 1, 8, 32>}, {pipeline_mode = #tpu.pipeline_mode<synchronous>, transform_indices = @transform_3, window_bounds = array<i64: 8, 8>}, {pipeline_mode = #tpu.pipeline_mode<synchronous>, transform_indices = @transform_4, window_bounds = array<i64: 32, 32>}, {pipeline_mode = #tpu.pipeline_mode<synchronous>, transform_indices = @transform_5, window_bounds = array<i64: 1, 32>}, {pipeline_mode = #tpu.pipeline_mode<synchronous>, transform_indices = @transform_6, window_bounds = array<i64: 32, 32>}, {pipeline_mode = #tpu.pipeline_mode<synchronous>, transform_indices = @transform_7, window_bounds = array<i64: 1, 32>}, {pipeline_mode = #tpu.pipeline_mode<synchronous>, transform_indices = @transform_8, window_bounds = array<i64: 32, 32>}, {pipeline_mode = #tpu.pipeline_mode<synchronous>, transform_indices = @transform_9, window_bounds = array<i64: 1, 32>}, {transform_indices = @transform_10, window_bounds = array<i64: 8, 32>}, {pipeline_mode = #tpu.pipeline_mode<synchronous>, transform_indices = @transform_11, window_bounds = array<i64: 1, 32>}, {transform_indices = @transform_12, window_bounds = array<i64: 1, 8, 32>}, {transform_indices = @transform_13, window_bounds = array<i64: 1, 1, 8, 8>}]} {
    %c0_i32 = arith.constant 0 : i32
    %0 = arith.cmpi eq, %arg1, %c0_i32 : i32
    %1 = arith.extui %0 : i1 to i32
    %c0_i32_0 = arith.constant 0 : i32
    %2 = arith.cmpi ne, %1, %c0_i32_0 : i32
    scf.if %2 {
      %c0_23 = arith.constant 0 : index
      %c0_24 = arith.constant 0 : index
      %c0_25 = arith.constant 0 : index
      %39 = vector.load %arg2[%c0_23, %c0_24, %c0_25] : memref<1x8x32xf32, #tpu.memory_space<vmem>>, vector<1x8x32xf32>
      %40 = vector.shape_cast %39 : vector<1x8x32xf32> to vector<8x32xf32>
      %41 = arith.truncf %40 : vector<8x32xf32> to vector<8x32xbf16>
      %c0_26 = arith.constant 0 : index
      %c0_27 = arith.constant 0 : index
      %c0_28 = arith.constant 0 : index
      %42 = vector.load %arg3[%c0_26, %c0_27, %c0_28] : memref<1x8x32xf32, #tpu.memory_space<vmem>>, vector<1x8x32xf32>
      %43 = vector.shape_cast %42 : vector<1x8x32xf32> to vector<8x32xf32>
      %44 = arith.truncf %43 : vector<8x32xf32> to vector<8x32xbf16>
      %c0_29 = arith.constant 0 : index
      %c0_30 = arith.constant 0 : index
      %c0_31 = arith.constant 0 : index
      %45 = vector.load %arg4[%c0_29, %c0_30, %c0_31] : memref<1x8x32xf32, #tpu.memory_space<vmem>>, vector<1x8x32xf32>
      %46 = vector.shape_cast %45 : vector<1x8x32xf32> to vector<8x32xf32>
      %47 = arith.truncf %46 : vector<8x32xf32> to vector<8x32xbf16>
      %c0_32 = arith.constant 0 : index
      %c0_33 = arith.constant 0 : index
      %48 = vector.load %arg6[%c0_32, %c0_33] : memref<32x32xbf16, #tpu.memory_space<vmem>>, vector<32x32xbf16>
      %cst_34 = arith.constant dense<0.000000e+00> : vector<8x32xf32>
      %49 = tpu.matmul %41, %48, %cst_34 {dimension_numbers = #tpu.dot_dimension_numbers<[1], [0], [0], [1], [0, 0, 1, 1], [], []>} : vector<8x32xbf16>, vector<32x32xbf16>, vector<8x32xf32> -> vector<8x32xf32>
      %c0_35 = arith.constant 0 : index
      %c0_36 = arith.constant 0 : index
      %50 = vector.load %arg7[%c0_35, %c0_36] : memref<1x32xf32, #tpu.memory_space<vmem>>, vector<1x32xf32>
      %51 = vector.broadcast %50 : vector<1x32xf32> to vector<8x32xf32>
      %52 = arith.addf %49, %51 : vector<8x32xf32>
      %c0_37 = arith.constant 0 : index
      %c0_38 = arith.constant 0 : index
      %53 = vector.load %arg8[%c0_37, %c0_38] : memref<32x32xbf16, #tpu.memory_space<vmem>>, vector<32x32xbf16>
      %cst_39 = arith.constant dense<0.000000e+00> : vector<8x32xf32>
      %54 = tpu.matmul %44, %53, %cst_39 {dimension_numbers = #tpu.dot_dimension_numbers<[1], [0], [0], [1], [0, 0, 1, 1], [], []>} : vector<8x32xbf16>, vector<32x32xbf16>, vector<8x32xf32> -> vector<8x32xf32>
      %c0_40 = arith.constant 0 : index
      %c0_41 = arith.constant 0 : index
      %55 = vector.load %arg9[%c0_40, %c0_41] : memref<1x32xf32, #tpu.memory_space<vmem>>, vector<1x32xf32>
      %56 = vector.broadcast %55 : vector<1x32xf32> to vector<8x32xf32>
      %57 = arith.addf %54, %56 : vector<8x32xf32>
      %c0_42 = arith.constant 0 : index
      %c0_43 = arith.constant 0 : index
      %58 = vector.load %arg10[%c0_42, %c0_43] : memref<32x32xbf16, #tpu.memory_space<vmem>>, vector<32x32xbf16>
      %cst_44 = arith.constant dense<0.000000e+00> : vector<8x32xf32>
      %59 = tpu.matmul %47, %58, %cst_44 {dimension_numbers = #tpu.dot_dimension_numbers<[1], [0], [0], [1], [0, 0, 1, 1], [], []>} : vector<8x32xbf16>, vector<32x32xbf16>, vector<8x32xf32> -> vector<8x32xf32>
      %c0_45 = arith.constant 0 : index
      %c0_46 = arith.constant 0 : index
      %60 = vector.load %arg11[%c0_45, %c0_46] : memref<1x32xf32, #tpu.memory_space<vmem>>, vector<1x32xf32>
      %61 = vector.broadcast %60 : vector<1x32xf32> to vector<8x32xf32>
      %62 = arith.addf %59, %61 : vector<8x32xf32>
      %cst_47 = arith.constant 0.353553385 : f32
      %63 = vector.broadcast %cst_47 : f32 to vector<8x32xf32>
      %64 = arith.mulf %52, %63 : vector<8x32xf32>
      %65 = vector.extract_strided_slice %64 {offsets = [0, 0], sizes = [8, 8], strides = [1, 1]} : vector<8x32xf32> to vector<8x8xf32>
      %66 = arith.truncf %65 : vector<8x8xf32> to vector<8x8xbf16>
      %c0_48 = arith.constant 0 : index
      %c0_49 = arith.constant 0 : index
      %c0_50 = arith.constant 0 : index
      %67 = vector.load %arg16[%c0_48, %c0_49, %c0_50] : memref<4x8x8xbf16, #tpu.memory_space<vmem>>, vector<1x8x8xbf16>
      %68 = vector.shape_cast %67 : vector<1x8x8xbf16> to vector<8x8xbf16>
      %69 = vector.shape_cast %66 : vector<8x8xbf16> to vector<1x8x8xbf16>
      tpu.vector_store %arg16[%c0_48, %c0_49, %c0_50], %69 {strides = array<i32>} : memref<4x8x8xbf16, #tpu.memory_space<vmem>>, vector<1x8x8xbf16>,
      %70 = vector.extract_strided_slice %57 {offsets = [0, 0], sizes = [8, 8], strides = [1, 1]} : vector<8x32xf32> to vector<8x8xf32>
      %71 = arith.truncf %70 : vector<8x8xf32> to vector<8x8xbf16>
      %c0_51 = arith.constant 0 : index
      %c0_52 = arith.constant 0 : index
      %c0_53 = arith.constant 0 : index
      %72 = vector.load %arg17[%c0_51, %c0_52, %c0_53] : memref<4x8x8xbf16, #tpu.memory_space<vmem>>, vector<1x8x8xbf16>
      %73 = vector.shape_cast %72 : vector<1x8x8xbf16> to vector<8x8xbf16>
      %74 = vector.shape_cast %71 : vector<8x8xbf16> to vector<1x8x8xbf16>
      tpu.vector_store %arg17[%c0_51, %c0_52, %c0_53], %74 {strides = array<i32>} : memref<4x8x8xbf16, #tpu.memory_space<vmem>>, vector<1x8x8xbf16>,
      %75 = vector.extract_strided_slice %62 {offsets = [0, 0], sizes = [8, 8], strides = [1, 1]} : vector<8x32xf32> to vector<8x8xf32>
      %76 = arith.truncf %75 : vector<8x8xf32> to vector<8x8xbf16>
      %c0_54 = arith.constant 0 : index
      %c0_55 = arith.constant 0 : index
      %c0_56 = arith.constant 0 : index
      %77 = vector.load %arg18[%c0_54, %c0_55, %c0_56] : memref<4x8x8xbf16, #tpu.memory_space<vmem>>, vector<1x8x8xbf16>
      %78 = vector.shape_cast %77 : vector<1x8x8xbf16> to vector<8x8xbf16>
      %79 = vector.shape_cast %76 : vector<8x8xbf16> to vector<1x8x8xbf16>
      tpu.vector_store %arg18[%c0_54, %c0_55, %c0_56], %79 {strides = array<i32>} : memref<4x8x8xbf16, #tpu.memory_space<vmem>>, vector<1x8x8xbf16>,
      %80 = vector.extract_strided_slice %64 {offsets = [0, 8], sizes = [8, 8], strides = [1, 1]} : vector<8x32xf32> to vector<8x8xf32>
      %81 = arith.truncf %80 : vector<8x8xf32> to vector<8x8xbf16>
      %c1 = arith.constant 1 : index
      %c0_57 = arith.constant 0 : index
      %c0_58 = arith.constant 0 : index
      %82 = vector.load %arg16[%c1, %c0_57, %c0_58] : memref<4x8x8xbf16, #tpu.memory_space<vmem>>, vector<1x8x8xbf16>
      %83 = vector.shape_cast %82 : vector<1x8x8xbf16> to vector<8x8xbf16>
      %84 = vector.shape_cast %81 : vector<8x8xbf16> to vector<1x8x8xbf16>
      tpu.vector_store %arg16[%c1, %c0_57, %c0_58], %84 {strides = array<i32>} : memref<4x8x8xbf16, #tpu.memory_space<vmem>>, vector<1x8x8xbf16>,
      %85 = vector.extract_strided_slice %57 {offsets = [0, 8], sizes = [8, 8], strides = [1, 1]} : vector<8x32xf32> to vector<8x8xf32>
      %86 = arith.truncf %85 : vector<8x8xf32> to vector<8x8xbf16>
      %c1_59 = arith.constant 1 : index
      %c0_60 = arith.constant 0 : index
      %c0_61 = arith.constant 0 : index
      %87 = vector.load %arg17[%c1_59, %c0_60, %c0_61] : memref<4x8x8xbf16, #tpu.memory_space<vmem>>, vector<1x8x8xbf16>
      %88 = vector.shape_cast %87 : vector<1x8x8xbf16> to vector<8x8xbf16>
      %89 = vector.shape_cast %86 : vector<8x8xbf16> to vector<1x8x8xbf16>
      tpu.vector_store %arg17[%c1_59, %c0_60, %c0_61], %89 {strides = array<i32>} : memref<4x8x8xbf16, #tpu.memory_space<vmem>>, vector<1x8x8xbf16>,
      %90 = vector.extract_strided_slice %62 {offsets = [0, 8], sizes = [8, 8], strides = [1, 1]} : vector<8x32xf32> to vector<8x8xf32>
      %91 = arith.truncf %90 : vector<8x8xf32> to vector<8x8xbf16>
      %c1_62 = arith.constant 1 : index
      %c0_63 = arith.constant 0 : index
      %c0_64 = arith.constant 0 : index
      %92 = vector.load %arg18[%c1_62, %c0_63, %c0_64] : memref<4x8x8xbf16, #tpu.memory_space<vmem>>, vector<1x8x8xbf16>
      %93 = vector.shape_cast %92 : vector<1x8x8xbf16> to vector<8x8xbf16>
      %94 = vector.shape_cast %91 : vector<8x8xbf16> to vector<1x8x8xbf16>
      tpu.vector_store %arg18[%c1_62, %c0_63, %c0_64], %94 {strides = array<i32>} : memref<4x8x8xbf16, #tpu.memory_space<vmem>>, vector<1x8x8xbf16>,
      %95 = vector.extract_strided_slice %64 {offsets = [0, 16], sizes = [8, 8], strides = [1, 1]} : vector<8x32xf32> to vector<8x8xf32>
      %96 = arith.truncf %95 : vector<8x8xf32> to vector<8x8xbf16>
      %c2 = arith.constant 2 : index
      %c0_65 = arith.constant 0 : index
      %c0_66 = arith.constant 0 : index
      %97 = vector.load %arg16[%c2, %c0_65, %c0_66] : memref<4x8x8xbf16, #tpu.memory_space<vmem>>, vector<1x8x8xbf16>
      %98 = vector.shape_cast %97 : vector<1x8x8xbf16> to vector<8x8xbf16>
      %99 = vector.shape_cast %96 : vector<8x8xbf16> to vector<1x8x8xbf16>
      tpu.vector_store %arg16[%c2, %c0_65, %c0_66], %99 {strides = array<i32>} : memref<4x8x8xbf16, #tpu.memory_space<vmem>>, vector<1x8x8xbf16>,
      %100 = vector.extract_strided_slice %57 {offsets = [0, 16], sizes = [8, 8], strides = [1, 1]} : vector<8x32xf32> to vector<8x8xf32>
      %101 = arith.truncf %100 : vector<8x8xf32> to vector<8x8xbf16>
      %c2_67 = arith.constant 2 : index
      %c0_68 = arith.constant 0 : index
      %c0_69 = arith.constant 0 : index
      %102 = vector.load %arg17[%c2_67, %c0_68, %c0_69] : memref<4x8x8xbf16, #tpu.memory_space<vmem>>, vector<1x8x8xbf16>
      %103 = vector.shape_cast %102 : vector<1x8x8xbf16> to vector<8x8xbf16>
      %104 = vector.shape_cast %101 : vector<8x8xbf16> to vector<1x8x8xbf16>
      tpu.vector_store %arg17[%c2_67, %c0_68, %c0_69], %104 {strides = array<i32>} : memref<4x8x8xbf16, #tpu.memory_space<vmem>>, vector<1x8x8xbf16>,
      %105 = vector.extract_strided_slice %62 {offsets = [0, 16], sizes = [8, 8], strides = [1, 1]} : vector<8x32xf32> to vector<8x8xf32>
      %106 = arith.truncf %105 : vector<8x8xf32> to vector<8x8xbf16>
      %c2_70 = arith.constant 2 : index
      %c0_71 = arith.constant 0 : index
      %c0_72 = arith.constant 0 : index
      %107 = vector.load %arg18[%c2_70, %c0_71, %c0_72] : memref<4x8x8xbf16, #tpu.memory_space<vmem>>, vector<1x8x8xbf16>
      %108 = vector.shape_cast %107 : vector<1x8x8xbf16> to vector<8x8xbf16>
      %109 = vector.shape_cast %106 : vector<8x8xbf16> to vector<1x8x8xbf16>
      tpu.vector_store %arg18[%c2_70, %c0_71, %c0_72], %109 {strides = array<i32>} : memref<4x8x8xbf16, #tpu.memory_space<vmem>>, vector<1x8x8xbf16>,
      %110 = vector.extract_strided_slice %64 {offsets = [0, 24], sizes = [8, 8], strides = [1, 1]} : vector<8x32xf32> to vector<8x8xf32>
      %111 = arith.truncf %110 : vector<8x8xf32> to vector<8x8xbf16>
      %c3 = arith.constant 3 : index
      %c0_73 = arith.constant 0 : index
      %c0_74 = arith.constant 0 : index
      %112 = vector.load %arg16[%c3, %c0_73, %c0_74] : memref<4x8x8xbf16, #tpu.memory_space<vmem>>, vector<1x8x8xbf16>
      %113 = vector.shape_cast %112 : vector<1x8x8xbf16> to vector<8x8xbf16>
      %114 = vector.shape_cast %111 : vector<8x8xbf16> to vector<1x8x8xbf16>
      tpu.vector_store %arg16[%c3, %c0_73, %c0_74], %114 {strides = array<i32>} : memref<4x8x8xbf16, #tpu.memory_space<vmem>>, vector<1x8x8xbf16>,
      %115 = vector.extract_strided_slice %57 {offsets = [0, 24], sizes = [8, 8], strides = [1, 1]} : vector<8x32xf32> to vector<8x8xf32>
      %116 = arith.truncf %115 : vector<8x8xf32> to vector<8x8xbf16>
      %c3_75 = arith.constant 3 : index
      %c0_76 = arith.constant 0 : index
      %c0_77 = arith.constant 0 : index
      %117 = vector.load %arg17[%c3_75, %c0_76, %c0_77] : memref<4x8x8xbf16, #tpu.memory_space<vmem>>, vector<1x8x8xbf16>
      %118 = vector.shape_cast %117 : vector<1x8x8xbf16> to vector<8x8xbf16>
      %119 = vector.shape_cast %116 : vector<8x8xbf16> to vector<1x8x8xbf16>
      tpu.vector_store %arg17[%c3_75, %c0_76, %c0_77], %119 {strides = array<i32>} : memref<4x8x8xbf16, #tpu.memory_space<vmem>>, vector<1x8x8xbf16>,
      %120 = vector.extract_strided_slice %62 {offsets = [0, 24], sizes = [8, 8], strides = [1, 1]} : vector<8x32xf32> to vector<8x8xf32>
      %121 = arith.truncf %120 : vector<8x8xf32> to vector<8x8xbf16>
      %c3_78 = arith.constant 3 : index
      %c0_79 = arith.constant 0 : index
      %c0_80 = arith.constant 0 : index
      %122 = vector.load %arg18[%c3_78, %c0_79, %c0_80] : memref<4x8x8xbf16, #tpu.memory_space<vmem>>, vector<1x8x8xbf16>
      %123 = vector.shape_cast %122 : vector<1x8x8xbf16> to vector<8x8xbf16>
      %124 = vector.shape_cast %121 : vector<8x8xbf16> to vector<1x8x8xbf16>
      tpu.vector_store %arg18[%c3_78, %c0_79, %c0_80], %124 {strides = array<i32>} : memref<4x8x8xbf16, #tpu.memory_space<vmem>>, vector<1x8x8xbf16>,
      %cst_81 = arith.constant 0.000000e+00 : f32
      %125 = vector.broadcast %cst_81 : f32 to vector<8x32xf32>
      %c0_82 = arith.constant 0 : index
      %c0_83 = arith.constant 0 : index
      %126 = vector.load %arg19[%c0_82, %c0_83] : memref<8x32xf32, #tpu.memory_space<vmem>>, vector<8x32xf32>
      tpu.vector_store %arg19[%c0_82, %c0_83], %125 {strides = array<i32>} : memref<8x32xf32, #tpu.memory_space<vmem>>, vector<8x32xf32>,
    } else {
    }
    %3 = arith.index_cast %arg1 : i32 to index
    %c0 = arith.constant 0 : index
    %c0_1 = arith.constant 0 : index
    %4 = vector.load %arg16[%3, %c0, %c0_1] : memref<4x8x8xbf16, #tpu.memory_space<vmem>>, vector<1x8x8xbf16>
    %5 = vector.shape_cast %4 : vector<1x8x8xbf16> to vector<8x8xbf16>
    %6 = arith.index_cast %arg1 : i32 to index
    %c0_2 = arith.constant 0 : index
    %c0_3 = arith.constant 0 : index
    %7 = vector.load %arg17[%6, %c0_2, %c0_3] : memref<4x8x8xbf16, #tpu.memory_space<vmem>>, vector<1x8x8xbf16>
    %8 = vector.shape_cast %7 : vector<1x8x8xbf16> to vector<8x8xbf16>
    %9 = arith.index_cast %arg1 : i32 to index
    %c0_4 = arith.constant 0 : index
    %c0_5 = arith.constant 0 : index
    %10 = vector.load %arg18[%9, %c0_4, %c0_5] : memref<4x8x8xbf16, #tpu.memory_space<vmem>>, vector<1x8x8xbf16>
    %11 = vector.shape_cast %10 : vector<1x8x8xbf16> to vector<8x8xbf16>
    %cst = arith.constant dense<0.000000e+00> : vector<8x8xf32>
    %12 = tpu.matmul %5, %8, %cst {dimension_numbers = #tpu.dot_dimension_numbers<[1], [1], [0], [0], [0, 0, 1, 0], [], []>} : vector<8x8xbf16>, vector<8x8xbf16>, vector<8x8xf32> -> vector<8x8xf32>
    %c0_6 = arith.constant 0 : index
    %c0_7 = arith.constant 0 : index
    %13 = vector.load %arg5[%c0_6, %c0_7] : memref<8x8xf32, #tpu.memory_space<vmem>>, vector<8x8xf32>
    %14 = arith.addf %12, %13 : vector<8x8xf32>
    %cst_8 = arith.constant dense<0xFF800000> : vector<8xf32>
    %15 = vector.multi_reduction <maximumf>, %14, %cst_8 [1] : vector<8x8xf32> to vector<8xf32>
    %16 = vector.shape_cast %15 : vector<8xf32> to vector<8x1xf32>
    %17 = vector.broadcast %16 : vector<8x1xf32> to vector<8x8xf32>
    %18 = arith.subf %14, %17 : vector<8x8xf32>
    %19 = math.exp %18 : vector<8x8xf32>
    %cst_9 = arith.constant dense<0.000000e+00> : vector<8xf32>
    %20 = vector.multi_reduction <add>, %19, %cst_9 [1] : vector<8x8xf32> to vector<8xf32>
    %21 = vector.shape_cast %20 : vector<8xf32> to vector<8x1xf32>
    %22 = tpu.reciprocal %21 {approx = true} : vector<8x1xf32> -> vector<8x1xf32>
    %23 = vector.broadcast %22 : vector<8x1xf32> to vector<8x8xf32>
    %24 = arith.mulf %19, %23 : vector<8x8xf32>
    %c0_10 = arith.constant 0 : index
    %c0_11 = arith.constant 0 : index
    %c0_12 = arith.constant 0 : index
    %c0_13 = arith.constant 0 : index
    %25 = vector.load %arg15[%c0_10, %c0_11, %c0_12, %c0_13] : memref<1x1x8x8xf32, #tpu.memory_space<vmem>>, vector<1x1x8x8xf32>
    %26 = vector.shape_cast %25 : vector<1x1x8x8xf32> to vector<8x8xf32>
    %27 = vector.shape_cast %24 : vector<8x8xf32> to vector<1x1x8x8xf32>
    tpu.vector_store %arg15[%c0_10, %c0_11, %c0_12, %c0_13], %27 {strides = array<i32>} : memref<1x1x8x8xf32, #tpu.memory_space<vmem>>, vector<1x1x8x8xf32>,
    %28 = arith.truncf %24 : vector<8x8xf32> to vector<8x8xbf16>
    %cst_14 = arith.constant dense<0.000000e+00> : vector<8x8xf32>
    %29 = tpu.matmul %28, %11, %cst_14 {dimension_numbers = #tpu.dot_dimension_numbers<[1], [0], [0], [1], [0, 0, 1, 1], [], []>} : vector<8x8xbf16>, vector<8x8xbf16>, vector<8x8xf32> -> vector<8x8xf32>
    %c0_15 = arith.constant 0 : index
    %c0_16 = arith.constant 0 : index
    %30 = vector.load %arg19[%c0_15, %c0_16] : memref<8x32xf32, #tpu.memory_space<vmem>>, vector<8x32xf32>
    %31 = arith.truncf %29 : vector<8x8xf32> to vector<8x8xbf16>
    %c0_17 = arith.constant 0 : index
    %c0_18 = arith.constant 0 : index
    %32 = vector.load %arg12[%c0_17, %c0_18] : memref<8x32xbf16, #tpu.memory_space<vmem>>, vector<8x32xbf16>
    %cst_19 = arith.constant dense<0.000000e+00> : vector<8x32xf32>
    %33 = tpu.matmul %31, %32, %cst_19 {dimension_numbers = #tpu.dot_dimension_numbers<[1], [0], [0], [1], [0, 0, 1, 1], [], []>} : vector<8x8xbf16>, vector<8x32xbf16>, vector<8x32xf32> -> vector<8x32xf32>
    %34 = arith.addf %30, %33 : vector<8x32xf32>
    %c0_20 = arith.constant 0 : index
    %c0_21 = arith.constant 0 : index
    %35 = vector.load %arg19[%c0_20, %c0_21] : memref<8x32xf32, #tpu.memory_space<vmem>>, vector<8x32xf32>
    tpu.vector_store %arg19[%c0_20, %c0_21], %34 {strides = array<i32>} : memref<8x32xf32, #tpu.memory_space<vmem>>, vector<8x32xf32>,
    %c3_i32 = arith.constant 3 : i32
    %36 = arith.cmpi eq, %arg1, %c3_i32 : i32
    %37 = arith.extui %36 : i1 to i32
    %c0_i32_22 = arith.constant 0 : i32
    %38 = arith.cmpi ne, %37, %c0_i32_22 : i32
    scf.if %38 {
      %c0_23 = arith.constant 0 : index
      %c0_24 = arith.constant 0 : index
      %39 = vector.load %arg19[%c0_23, %c0_24] : memref<8x32xf32, #tpu.memory_space<vmem>>, vector<8x32xf32>
      %c0_25 = arith.constant 0 : index
      %c0_26 = arith.constant 0 : index
      %40 = vector.load %arg13[%c0_25, %c0_26] : memref<1x32xf32, #tpu.memory_space<vmem>>, vector<1x32xf32>
      %41 = vector.broadcast %40 : vector<1x32xf32> to vector<8x32xf32>
      %42 = arith.addf %39, %41 : vector<8x32xf32>
      %c0_27 = arith.constant 0 : index
      %c0_28 = arith.constant 0 : index
      %c0_29 = arith.constant 0 : index
      %43 = vector.load %arg14[%c0_27, %c0_28, %c0_29] : memref<1x8x32xf32, #tpu.memory_space<vmem>>, vector<1x8x32xf32>
      %44 = vector.shape_cast %43 : vector<1x8x32xf32> to vector<8x32xf32>
      %45 = vector.shape_cast %42 : vector<8x32xf32> to vector<1x8x32xf32>
      tpu.vector_store %arg14[%c0_27, %c0_28, %c0_29], %45 {strides = array<i32>} : memref<1x8x32xf32, #tpu.memory_space<vmem>>, vector<1x8x32xf32>,
    } else {
    }
    return
  }
  func.func @transform_0(%arg0: i32, %arg1: i32) -> (i32, i32, i32) {
    %c0_i32 = arith.constant 0 : i32
    %c0_i32_0 = arith.constant 0 : i32
    %c0_i32_1 = arith.constant 0 : i32
    return %arg0, %c0_i32, %c0_i32_0 : i32, i32, i32
  }
  func.func @transform_1(%arg0: i32, %arg1: i32) -> (i32, i32, i32) {
    %c0_i32 = arith.constant 0 : i32
    %c0_i32_0 = arith.constant 0 : i32
    %c0_i32_1 = arith.constant 0 : i32
    return %arg0, %c0_i32, %c0_i32_0 : i32, i32, i32
  }
  func.func @transform_2(%arg0: i32, %arg1: i32) -> (i32, i32, i32) {
    %c0_i32 = arith.constant 0 : i32
    %c0_i32_0 = arith.constant 0 : i32
    %c0_i32_1 = arith.constant 0 : i32
    return %arg0, %c0_i32, %c0_i32_0 : i32, i32, i32
  }
  func.func @transform_3(%arg0: i32, %arg1: i32) -> (i32, i32) {
    %c0_i32 = arith.constant 0 : i32
    %c0_i32_0 = arith.constant 0 : i32
    %c0_i32_1 = arith.constant 0 : i32
    return %c0_i32, %c0_i32_0 : i32, i32
  }
  func.func @transform_4(%arg0: i32, %arg1: i32) -> (i32, i32) {
    %c0_i32 = arith.constant 0 : i32
    %c0_i32_0 = arith.constant 0 : i32
    %c0_i32_1 = arith.constant 0 : i32
    return %c0_i32, %c0_i32_0 : i32, i32
  }
  func.func @transform_5(%arg0: i32, %arg1: i32) -> (i32, i32) {
    %c0_i32 = arith.constant 0 : i32
    %c0_i32_0 = arith.constant 0 : i32
    %c0_i32_1 = arith.constant 0 : i32
    return %c0_i32, %c0_i32_0 : i32, i32
  }
  func.func @transform_6(%arg0: i32, %arg1: i32) -> (i32, i32) {
    %c0_i32 = arith.constant 0 : i32
    %c0_i32_0 = arith.constant 0 : i32
    %c0_i32_1 = arith.constant 0 : i32
    return %c0_i32, %c0_i32_0 : i32, i32
  }
  func.func @transform_7(%arg0: i32, %arg1: i32) -> (i32, i32) {
    %c0_i32 = arith.constant 0 : i32
    %c0_i32_0 = arith.constant 0 : i32
    %c0_i32_1 = arith.constant 0 : i32
    return %c0_i32, %c0_i32_0 : i32, i32
  }
  func.func @transform_8(%arg0: i32, %arg1: i32) -> (i32, i32) {
    %c0_i32 = arith.constant 0 : i32
    %c0_i32_0 = arith.constant 0 : i32
    %c0_i32_1 = arith.constant 0 : i32
    return %c0_i32, %c0_i32_0 : i32, i32
  }
  func.func @transform_9(%arg0: i32, %arg1: i32) -> (i32, i32) {
    %c0_i32 = arith.constant 0 : i32
    %c0_i32_0 = arith.constant 0 : i32
    %c0_i32_1 = arith.constant 0 : i32
    return %c0_i32, %c0_i32_0 : i32, i32
  }
  func.func @transform_10(%arg0: i32, %arg1: i32) -> (i32, i32) {
    %c0_i32 = arith.constant 0 : i32
    %c0_i32_0 = arith.constant 0 : i32
    return %arg1, %c0_i32 : i32, i32
  }
  func.func @transform_11(%arg0: i32, %arg1: i32) -> (i32, i32) {
    %c0_i32 = arith.constant 0 : i32
    %c0_i32_0 = arith.constant 0 : i32
    %c0_i32_1 = arith.constant 0 : i32
    return %c0_i32, %c0_i32_0 : i32, i32
  }
  func.func @transform_12(%arg0: i32, %arg1: i32) -> (i32, i32, i32) {
    %c0_i32 = arith.constant 0 : i32
    %c0_i32_0 = arith.constant 0 : i32
    %c0_i32_1 = arith.constant 0 : i32
    return %arg0, %c0_i32, %c0_i32_0 : i32, i32, i32
  }
  func.func @transform_13(%arg0: i32, %arg1: i32) -> (i32, i32, i32, i32) {
    %c0_i32 = arith.constant 0 : i32
    %c0_i32_0 = arith.constant 0 : i32
    %c0_i32_1 = arith.constant 0 : i32
    return %arg0, %arg1, %c0_i32, %c0_i32_0 : i32, i32, i32, i32
  }
}

</mosaic_0001>

<llo_original>
// kernel: tpu_custom_call.1
$region0: #{tpu_custom_call.1}
  #allocation0 [shape = 'u32[]', space=smem, size = 0x4, offset = 0x4, fixed_abs, tag = 'smem constant byte address 0x4 - core index']
  #allocation1 [shape = 'u32[72,128]{1,0:T(1,128)}', space=vmem, size = 0x9000, scoped, tag = 'internal scratch']
  #allocation2 [shape = 'bf16[4,8,8]{2,1,0:T(8,128)(2,1)}', space=vmem, size = 0x2000, scoped, tag = 'scratch operand']
  #allocation3 [shape = 'bf16[4,8,8]{2,1,0:T(8,128)(2,1)}', space=vmem, size = 0x2000, scoped, tag = 'scratch operand']
  #allocation4 [shape = 'bf16[4,8,8]{2,1,0:T(8,128)(2,1)}', space=vmem, size = 0x2000, scoped, tag = 'scratch operand']
  #allocation5 [shape = 'f32[8,32]{1,0:T(8,128)}', space=vmem, size = 0x1000, scoped, tag = 'scratch operand']
  %s0 = inlined_call_operand.hbm [shape: f32[2,8,32], index: 0, kind: input, shape index: {}]
  %s1 = inlined_call_operand.hbm [shape: f32[2,8,32], index: 1, kind: input, shape index: {}]
  %s2 = inlined_call_operand.hbm [shape: f32[2,8,32], index: 2, kind: input, shape index: {}]
  %s3 = inlined_call_operand.hbm [shape: f32[8,8], index: 3, kind: input, shape index: {}]
  %s4 = inlined_call_operand.hbm [shape: bf16[32,32], index: 4, kind: input, shape index: {}]
  %s5 = inlined_call_operand.vmem [shape: f32[1,32], index: 5, kind: input, shape index: {}]
  %s6 = inlined_call_operand.hbm [shape: bf16[32,32], index: 6, kind: input, shape index: {}]
  %s7 = inlined_call_operand.vmem [shape: f32[1,32], index: 7, kind: input, shape index: {}]
  %s8 = inlined_call_operand.hbm [shape: bf16[32,32], index: 8, kind: input, shape index: {}]
  %s9 = inlined_call_operand.vmem [shape: f32[1,32], index: 9, kind: input, shape index: {}]
  %s10 = inlined_call_operand.hbm [shape: bf16[32,32], index: 10, kind: input, shape index: {}]
  %s11 = inlined_call_operand.vmem [shape: f32[1,32], index: 11, kind: input, shape index: {}]
  %s12 = inlined_call_operand.hbm [shape: f32[2,8,32], index: 12, kind: output, shape index: {0}]
  %s13 = inlined_call_operand.hbm [shape: f32[2,4,8,8], index: 13, kind: output, shape index: {1}]
  %14 = xla_tuple %s12, %s13
  %s15 = sld [smem:[#allocation0]]
  $region129: #{tpu_custom_call.1} parent=0
    _
  %s17 = ssub.s32 1, %s15
  %s18 = scalar_select 0, %s17, %s15
  $region1: #{tpu_custom_call.1} parent=0
    #allocation6 [shape = 'u8[8192]{0}', space=vmem, size = 0x2000, scoped, tag = 'input window, operand 0']
    #allocation7 [shape = 's32[2]{0}', space=sflag, size = 0x8, scoped, tag = 'scoped memory for tpu_custom_call.1']
    #allocation8 [shape = 's32[2]{0}', space=sflag, size = 0x8, scoped, tag = 'scoped memory for tpu_custom_call.1']
    #allocation9 [shape = 'u8[8192]{0}', space=vmem, size = 0x2000, scoped, tag = 'input window, operand 1']
    #allocation10 [shape = 's32[2]{0}', space=sflag, size = 0x8, scoped, tag = 'scoped memory for tpu_custom_call.1']
    #allocation11 [shape = 'u8[8192]{0}', space=vmem, size = 0x2000, scoped, tag = 'input window, operand 2']
    #allocation12 [shape = 'u8[4096]{0}', space=vmem, size = 0x1000, scoped, tag = 'input window, operand 3, single buffered']
    #allocation13 [shape = 's32[1]{0}', space=sflag, size = 0x4, scoped, tag = 'scoped memory for tpu_custom_call.1']
    #allocation14 [shape = 'u8[8192]{0}', space=vmem, size = 0x2000, scoped, tag = 'input window, operand 4, single buffered']
    #allocation15 [shape = 'u8[8192]{0}', space=vmem, size = 0x2000, scoped, tag = 'input window, operand 6, single buffered']
    #allocation16 [shape = 's32[1]{0}', space=sflag, size = 0x4, scoped, tag = 'scoped memory for tpu_custom_call.1']
    #allocation17 [shape = 'u8[8192]{0}', space=vmem, size = 0x2000, scoped, tag = 'input window, operand 8, single buffered']
    #allocation18 [shape = 'u8[4096]{0}', space=vmem, size = 0x1000, scoped, tag = 'input window, operand 10']
    #allocation19 [shape = 's32[2]{0}', space=sflag, size = 0x8, scoped, tag = 'scoped memory for tpu_custom_call.1']
    #allocation20 [shape = 'u8[8192]{0}', space=vmem, size = 0x2000, scoped, tag = 'output window, operand 0']
    #allocation21 [shape = 'u8[8192]{0}', space=vmem, size = 0x2000, scoped, tag = 'output window, operand 1']
    #allocation22 [shape = 's32[2]{0}', space=sflag, size = 0x8, scoped, tag = 'scoped memory for tpu_custom_call.1']
    %19 = vsyncpa [#allocation7], 0
    %s20 = scalar_lea.sflag [#allocation7], 1
    %21 = vsyncpa %s20, 0
    %22 = vsyncpa [#allocation10], 0
    %s23 = scalar_lea.sflag [#allocation10], 1
    %24 = vsyncpa %s23, 0
    %25 = vsyncpa [#allocation13], 0
    %26 = vsyncpa [#allocation16], 0
    %27 = vsyncpa [#allocation19], 0
    %s28 = scalar_lea.sflag [#allocation19], 1
    %29 = vsyncpa %s28, 0
    %30 = vsyncpa [#allocation8], 0
    %s31 = scalar_lea.sflag [#allocation8], 1
    %32 = vsyncpa %s31, 0
    %33 = vsyncpa [#allocation22], 0
    %s34 = scalar_lea.sflag [#allocation22], 1
    %35 = vsyncpa %s34, 0
    loop: start=0, step=1, limit=10
    $region2: #{tpu_custom_call.1} parent=1 // loop_pre_header
      _
    $region3: #{tpu_custom_call.1} parent=1 // loop_header
      %s37 = sphi 0, %s41
      %p38 = scmp.ge.s32.totalorder %s37, 10
      %s44 = sphi 0, %s56
      %s45 = sphi 0, %s52
      %s46 = sphi 0, %s44
      %s47 = sphi 0, %s45
      %s48 = sphi 0, %s46
      %s49 = sphi 0, %s47
      %s59 = sphi 0, %s61
      %s62 = sphi 0, %s59
      %s63 = sphi 0, %s62
      %s79 = sphi 0, %s63
      %s85 = sphi 0, %s87
      %s88 = sphi 0, %s85
      %s89 = sphi 0, %s88
      %s105 = sphi 0, %s89
      %s111 = sphi 0, %s113
      %s114 = sphi 0, %s111
      %s115 = sphi 0, %s114
      %s131 = sphi 0, %s115
      %s135 = sphi 0, %s135
      %s137 = sphi 0, %s135
      %s138 = sphi 0, %s137
      %s152 = sphi 0, %s138
      %s156 = sphi 0, %s156
      %s158 = sphi 0, %s156
      %s159 = sphi 0, %s158
      %s173 = sphi 0, %s159
      %s177 = sphi 0, %s177
      %s179 = sphi 0, %s177
      %s180 = sphi 0, %s179
      %s194 = sphi 0, %s180
      %s198 = sphi 0, %s198
      %s200 = sphi 0, %s198
      %s201 = sphi 0, %s200
      %s215 = sphi 0, %s201
      %s219 = sphi 0, %s219
      %s221 = sphi 0, %s219
      %s222 = sphi 0, %s221
      %s236 = sphi 0, %s222
      %s240 = sphi 0, %s240
      %s242 = sphi 0, %s240
      %s243 = sphi 0, %s242
      %s257 = sphi 0, %s243
      %s261 = sphi 0, %s261
      %s263 = sphi 0, %s261
      %s264 = sphi 0, %s263
      %s278 = sphi 0, %s264
      %s284 = sphi 0, %s286
      %s287 = sphi 0, %s284
      %s288 = sphi 0, %s287
      %s304 = sphi 0, %s288
      %s308 = sphi 0, %s308
      %s310 = sphi 0, %s308
      %s311 = sphi 0, %s310
      %s325 = sphi 0, %s311
      %s331 = sphi 0, %s333
      %s334 = sphi 0, %s331
      %s335 = sphi 0, %s334
      %s351 = sphi 0, %s335
      %s359 = sphi 0, %s361
      %s362 = sphi 0, %s359
      %s363 = sphi 0, %s362
      %s379 = sphi 0, %s363
    $region4: #{tpu_custom_call.1} parent=1 // loop_header_branch
      %40 = sbr.rel (%p38) target = $region8
    $region5: #{tpu_custom_call.1} parent=1 // loop_body
      %s42 = ssub.s32 %s37, 1
      %s43 = ssub.s32 %s37, 2
      %s50 = sadd.s32 1, %s45
      %p51 = scmp.ge.s32.totalorder %s50, 4
      %s52 = scalar_select %p51, 0, %s50
      %s53 = sadd.s32 1, %s44
      %s54 = scalar_select %p51, %s53, %s44
      %p55 = scmp.ge.s32.totalorder %s54, 2
      %s56 = scalar_select %p55, 0, %s54
      %s57 = ssub.s32 %s44, %s56
      %p58 = scmp.eq.s32.totalorder %s57, 0
      %s60 = sadd.s32 %s59, 1
      %s61 = scalar_select %p58, %s59, %s60
      %p64 = pneg %p58
      %p65 = scmp.eq.s32.totalorder %s37, 7
      %p66 = por %p64, %p65
      %p67 = scmp.ne.s32.totalorder %s59, %s62
      %p68 = scmp.eq.s32.totalorder %s37, 0
      %p69 = por %p67, %p68
      %p70 = scmp.ne.s32.totalorder %s59, %s62
      %p71 = scmp.eq.s32.totalorder %s42, 7
      %p72 = por %p70, %p71
      %p73 = scmp.ne.s32.totalorder %s62, %s63
      %p74 = scmp.eq.s32.totalorder %s42, 0
      %p75 = por %p73, %p74
      %p76 = scmp.ne.s32.totalorder %s62, %s63
      %p77 = scmp.eq.s32.totalorder %s43, 7
      %p78 = por %p76, %p77
      %p80 = scmp.ne.s32.totalorder %s63, %s79
      %p81 = scmp.eq.s32.totalorder %s43, 0
      %p82 = por %p80, %p81
      %s83 = ssub.s32 %s44, %s56
      %p84 = scmp.eq.s32.totalorder %s83, 0
      %s86 = sadd.s32 %s85, 1
      %s87 = scalar_select %p84, %s85, %s86
      %p90 = pneg %p84
      %p91 = scmp.eq.s32.totalorder %s37, 7
      %p92 = por %p90, %p91
      %p93 = scmp.ne.s32.totalorder %s85, %s88
      %p94 = scmp.eq.s32.totalorder %s37, 0
      %p95 = por %p93, %p94
      %p96 = scmp.ne.s32.totalorder %s85, %s88
      %p97 = scmp.eq.s32.totalorder %s42, 7
      %p98 = por %p96, %p97
      %p99 = scmp.ne.s32.totalorder %s88, %s89
      %p100 = scmp.eq.s32.totalorder %s42, 0
      %p101 = por %p99, %p100
      %p102 = scmp.ne.s32.totalorder %s88, %s89
      %p103 = scmp.eq.s32.totalorder %s43, 7
      %p104 = por %p102, %p103
      %p106 = scmp.ne.s32.totalorder %s89, %s105
      %p107 = scmp.eq.s32.totalorder %s43, 0
      %p108 = por %p106, %p107
      %s109 = ssub.s32 %s44, %s56
      %p110 = scmp.eq.s32.totalorder %s109, 0
      %s112 = sadd.s32 %s111, 1
      %s113 = scalar_select %p110, %s111, %s112
      %p116 = pneg %p110
      %p117 = scmp.eq.s32.totalorder %s37, 7
      %p118 = por %p116, %p117
      %p119 = scmp.ne.s32.totalorder %s111, %s114
      %p120 = scmp.eq.s32.totalorder %s37, 0
      %p121 = por %p119, %p120
      %p122 = scmp.ne.s32.totalorder %s111, %s114
      %p123 = scmp.eq.s32.totalorder %s42, 7
      %p124 = por %p122, %p123
      %p125 = scmp.ne.s32.totalorder %s114, %s115
      %p126 = scmp.eq.s32.totalorder %s42, 0
      %p127 = por %p125, %p126
      %p128 = scmp.ne.s32.totalorder %s114, %s115
      %p129 = scmp.eq.s32.totalorder %s43, 7
      %p130 = por %p128, %p129
      %p132 = scmp.ne.s32.totalorder %s115, %s131
      %p133 = scmp.eq.s32.totalorder %s43, 0
      %p134 = por %p132, %p133
      %s136 = sadd.s32 %s135, 1
      %p139 = scmp.eq.s32.totalorder %s37, 7
      %p140 = scmp.ne.s32.totalorder %s135, %s137
      %p141 = scmp.eq.s32.totalorder %s37, 0
      %p142 = por %p140, %p141
      %p143 = scmp.ne.s32.totalorder %s135, %s137
      %p144 = scmp.eq.s32.totalorder %s42, 7
      %p145 = por %p143, %p144
      %p146 = scmp.ne.s32.totalorder %s137, %s138
      %p147 = scmp.eq.s32.totalorder %s42, 0
      %p148 = por %p146, %p147
      %p149 = scmp.ne.s32.totalorder %s137, %s138
      %p150 = scmp.eq.s32.totalorder %s43, 7
      %p151 = por %p149, %p150
      %p153 = scmp.ne.s32.totalorder %s138, %s152
      %p154 = scmp.eq.s32.totalorder %s43, 0
      %p155 = por %p153, %p154
      %s157 = sadd.s32 %s156, 1
      %p160 = scmp.eq.s32.totalorder %s37, 7
      %p161 = scmp.ne.s32.totalorder %s156, %s158
      %p162 = scmp.eq.s32.totalorder %s37, 0
      %p163 = por %p161, %p162
      %p164 = scmp.ne.s32.totalorder %s156, %s158
      %p165 = scmp.eq.s32.totalorder %s42, 7
      %p166 = por %p164, %p165
      %p167 = scmp.ne.s32.totalorder %s158, %s159
      %p168 = scmp.eq.s32.totalorder %s42, 0
      %p169 = por %p167, %p168
      %p170 = scmp.ne.s32.totalorder %s158, %s159
      %p171 = scmp.eq.s32.totalorder %s43, 7
      %p172 = por %p170, %p171
      %p174 = scmp.ne.s32.totalorder %s159, %s173
      %p175 = scmp.eq.s32.totalorder %s43, 0
      %p176 = por %p174, %p175
      %s178 = sadd.s32 %s177, 1
      %p181 = scmp.eq.s32.totalorder %s37, 7
      %p182 = scmp.ne.s32.totalorder %s177, %s179
      %p183 = scmp.eq.s32.totalorder %s37, 0
      %p184 = por %p182, %p183
      %p185 = scmp.ne.s32.totalorder %s177, %s179
      %p186 = scmp.eq.s32.totalorder %s42, 7
      %p187 = por %p185, %p186
      %p188 = scmp.ne.s32.totalorder %s179, %s180
      %p189 = scmp.eq.s32.totalorder %s42, 0
      %p190 = por %p188, %p189
      %p191 = scmp.ne.s32.totalorder %s179, %s180
      %p192 = scmp.eq.s32.totalorder %s43, 7
      %p193 = por %p191, %p192
      %p195 = scmp.ne.s32.totalorder %s180, %s194
      %p196 = scmp.eq.s32.totalorder %s43, 0
      %p197 = por %p195, %p196
      %s199 = sadd.s32 %s198, 1
      %p202 = scmp.eq.s32.totalorder %s37, 7
      %p203 = scmp.ne.s32.totalorder %s198, %s200
      %p204 = scmp.eq.s32.totalorder %s37, 0
      %p205 = por %p203, %p204
      %p206 = scmp.ne.s32.totalorder %s198, %s200
      %p207 = scmp.eq.s32.totalorder %s42, 7
      %p208 = por %p206, %p207
      %p209 = scmp.ne.s32.totalorder %s200, %s201
      %p210 = scmp.eq.s32.totalorder %s42, 0
      %p211 = por %p209, %p210
      %p212 = scmp.ne.s32.totalorder %s200, %s201
      %p213 = scmp.eq.s32.totalorder %s43, 7
      %p214 = por %p212, %p213
      %p216 = scmp.ne.s32.totalorder %s201, %s215
      %p217 = scmp.eq.s32.totalorder %s43, 0
      %p218 = por %p216, %p217
      %s220 = sadd.s32 %s219, 1
      %p223 = scmp.eq.s32.totalorder %s37, 7
      %p224 = scmp.ne.s32.totalorder %s219, %s221
      %p225 = scmp.eq.s32.totalorder %s37, 0
      %p226 = por %p224, %p225
      %p227 = scmp.ne.s32.totalorder %s219, %s221
      %p228 = scmp.eq.s32.totalorder %s42, 7
      %p229 = por %p227, %p228
      %p230 = scmp.ne.s32.totalorder %s221, %s222
      %p231 = scmp.eq.s32.totalorder %s42, 0
      %p232 = por %p230, %p231
      %p233 = scmp.ne.s32.totalorder %s221, %s222
      %p234 = scmp.eq.s32.totalorder %s43, 7
      %p235 = por %p233, %p234
      %p237 = scmp.ne.s32.totalorder %s222, %s236
      %p238 = scmp.eq.s32.totalorder %s43, 0
      %p239 = por %p237, %p238
      %s241 = sadd.s32 %s240, 1
      %p244 = scmp.eq.s32.totalorder %s37, 7
      %p245 = scmp.ne.s32.totalorder %s240, %s242
      %p246 = scmp.eq.s32.totalorder %s37, 0
      %p247 = por %p245, %p246
      %p248 = scmp.ne.s32.totalorder %s240, %s242
      %p249 = scmp.eq.s32.totalorder %s42, 7
      %p250 = por %p248, %p249
      %p251 = scmp.ne.s32.totalorder %s242, %s243
      %p252 = scmp.eq.s32.totalorder %s42, 0
      %p253 = por %p251, %p252
      %p254 = scmp.ne.s32.totalorder %s242, %s243
      %p255 = scmp.eq.s32.totalorder %s43, 7
      %p256 = por %p254, %p255
      %p258 = scmp.ne.s32.totalorder %s243, %s257
      %p259 = scmp.eq.s32.totalorder %s43, 0
      %p260 = por %p258, %p259
      %s262 = sadd.s32 %s261, 1
      %p265 = scmp.eq.s32.totalorder %s37, 7
      %p266 = scmp.ne.s32.totalorder %s261, %s263
      %p267 = scmp.eq.s32.totalorder %s37, 0
      %p268 = por %p266, %p267
      %p269 = scmp.ne.s32.totalorder %s261, %s263
      %p270 = scmp.eq.s32.totalorder %s42, 7
      %p271 = por %p269, %p270
      %p272 = scmp.ne.s32.totalorder %s263, %s264
      %p273 = scmp.eq.s32.totalorder %s42, 0
      %p274 = por %p272, %p273
      %p275 = scmp.ne.s32.totalorder %s263, %s264
      %p276 = scmp.eq.s32.totalorder %s43, 7
      %p277 = por %p275, %p276
      %p279 = scmp.ne.s32.totalorder %s264, %s278
      %p280 = scmp.eq.s32.totalorder %s43, 0
      %p281 = por %p279, %p280
      %s282 = ssub.s32 %s45, %s52
      %p283 = scmp.eq.s32.totalorder %s282, 0
      %s285 = sadd.s32 %s284, 1
      %s286 = scalar_select %p283, %s284, %s285
      %p289 = pneg %p283
      %p290 = scmp.eq.s32.totalorder %s37, 7
      %p291 = por %p289, %p290
      %p292 = scmp.ne.s32.totalorder %s284, %s287
      %p293 = scmp.eq.s32.totalorder %s37, 0
      %p294 = por %p292, %p293
      %p295 = scmp.ne.s32.totalorder %s284, %s287
      %p296 = scmp.eq.s32.totalorder %s42, 7
      %p297 = por %p295, %p296
      %p298 = scmp.ne.s32.totalorder %s287, %s288
      %p299 = scmp.eq.s32.totalorder %s42, 0
      %p300 = por %p298, %p299
      %p301 = scmp.ne.s32.totalorder %s287, %s288
      %p302 = scmp.eq.s32.totalorder %s43, 7
      %p303 = por %p301, %p302
      %p305 = scmp.ne.s32.totalorder %s288, %s304
      %p306 = scmp.eq.s32.totalorder %s43, 0
      %p307 = por %p305, %p306
      %s309 = sadd.s32 %s308, 1
      %p312 = scmp.eq.s32.totalorder %s37, 7
      %p313 = scmp.ne.s32.totalorder %s308, %s310
      %p314 = scmp.eq.s32.totalorder %s37, 0
      %p315 = por %p313, %p314
      %p316 = scmp.ne.s32.totalorder %s308, %s310
      %p317 = scmp.eq.s32.totalorder %s42, 7
      %p318 = por %p316, %p317
      %p319 = scmp.ne.s32.totalorder %s310, %s311
      %p320 = scmp.eq.s32.totalorder %s42, 0
      %p321 = por %p319, %p320
      %p322 = scmp.ne.s32.totalorder %s310, %s311
      %p323 = scmp.eq.s32.totalorder %s43, 7
      %p324 = por %p322, %p323
      %p326 = scmp.ne.s32.totalorder %s311, %s325
      %p327 = scmp.eq.s32.totalorder %s43, 0
      %p328 = por %p326, %p327
      %s329 = ssub.s32 %s44, %s56
      %p330 = scmp.eq.s32.totalorder %s329, 0
      %s332 = sadd.s32 %s331, 1
      %s333 = scalar_select %p330, %s331, %s332
      %p336 = pneg %p330
      %p337 = scmp.eq.s32.totalorder %s37, 7
      %p338 = por %p336, %p337
      %p339 = scmp.ne.s32.totalorder %s331, %s334
      %p340 = scmp.eq.s32.totalorder %s37, 0
      %p341 = por %p339, %p340
      %p342 = scmp.ne.s32.totalorder %s331, %s334
      %p343 = scmp.eq.s32.totalorder %s42, 7
      %p344 = por %p342, %p343
      %p345 = scmp.ne.s32.totalorder %s334, %s335
      %p346 = scmp.eq.s32.totalorder %s42, 0
      %p347 = por %p345, %p346
      %p348 = scmp.ne.s32.totalorder %s334, %s335
      %p349 = scmp.eq.s32.totalorder %s43, 7
      %p350 = por %p348, %p349
      %p352 = scmp.ne.s32.totalorder %s335, %s351
      %p353 = scmp.eq.s32.totalorder %s43, 0
      %p354 = por %p352, %p353
      %s355 = ssub.s32 %s44, %s56
      %s356 = ssub.s32 %s45, %s52
      %s357 = sor.u32 %s355, %s356
      %p358 = scmp.eq.s32.totalorder %s357, 0
      %s360 = sadd.s32 %s359, 1
      %s361 = scalar_select %p358, %s359, %s360
      %p364 = pneg %p358
      %p365 = scmp.eq.s32.totalorder %s37, 7
      %p366 = por %p364, %p365
      %p367 = scmp.ne.s32.totalorder %s359, %s362
      %p368 = scmp.eq.s32.totalorder %s37, 0
      %p369 = por %p367, %p368
      %p370 = scmp.ne.s32.totalorder %s359, %s362
      %p371 = scmp.eq.s32.totalorder %s42, 7
      %p372 = por %p370, %p371
      %p373 = scmp.ne.s32.totalorder %s362, %s363
      %p374 = scmp.eq.s32.totalorder %s42, 0
      %p375 = por %p373, %p374
      %p376 = scmp.ne.s32.totalorder %s362, %s363
      %p377 = scmp.eq.s32.totalorder %s43, 7
      %p378 = por %p376, %p377
      %p380 = scmp.ne.s32.totalorder %s363, %s379
      %p381 = scmp.eq.s32.totalorder %s43, 0
      %p382 = por %p380, %p381
      %p383 = scmp.le.s32.totalorder 1, %s37
      %p384 = scmp.lt.s32.totalorder %s37, 9
      %p385 = pnand %p383, %p384
      %p386 = pneg %p385
      // Predicated region
      $region9: #{tpu_custom_call.1} parent=5 // pred_check
        _
      $region10: #{tpu_custom_call.1} parent=5 // pred_check_branch
        %388 = sbr.rel (%p385) target = $region12
      $region11: #{tpu_custom_call.1} parent=5 // pred_region
        %s389 = ssub.s32 %s37, 1
        // Predicated region
        $region13: #{tpu_custom_call.1} parent=11 // pred_check
          %p390 = pneg %p148
        $region14: #{tpu_custom_call.1} parent=11 // pred_check_branch
          %392 = sbr.rel (%p390) target = $region16
        $region15: #{tpu_custom_call.1} parent=11 // pred_region
          %394 = vsyncadd [#allocation13], 0
          %s396 = sshll.u32 %s3, 4
          %s397 = int_to_ptr.hbm [resolvable:$true] %s396
          %s398 = sshll.u32 [#allocation12], 4
          %s399 = int_to_ptr.vmem [resolvable:$true] %s398
          %401 = dma.hbm_to_vmem [thread:$0]  %s397, 128, %s399, [#allocation13]
        $region16: #{tpu_custom_call.1} parent=11 // pred_fallthru
          _
        // Predicated region
        $region17: #{tpu_custom_call.1} parent=11 // pred_check
          %p402 = pneg %p169
        $region18: #{tpu_custom_call.1} parent=11 // pred_check_branch
          %404 = sbr.rel (%p402) target = $region20
        $region19: #{tpu_custom_call.1} parent=11 // pred_region
          %406 = vsyncadd [#allocation13], 0
          %s407 = sshll.u32 %s4, 4
          %s408 = int_to_ptr.hbm [resolvable:$true] %s407
          %s409 = sshll.u32 [#allocation14], 4
          %s410 = int_to_ptr.vmem [resolvable:$true] %s409
          %415 = dma.hbm_to_vmem [thread:$0]  %s408, 256, %s410, [#allocation13], 64, 64, 4
        $region20: #{tpu_custom_call.1} parent=11 // pred_fallthru
          _
        // Predicated region
        $region21: #{tpu_custom_call.1} parent=11 // pred_check
          %p416 = pneg %p190
        $region22: #{tpu_custom_call.1} parent=11 // pred_check_branch
          %418 = sbr.rel (%p416) target = $region24
        $region23: #{tpu_custom_call.1} parent=11 // pred_region
          _
        $region24: #{tpu_custom_call.1} parent=11 // pred_fallthru
          _
        // Predicated region
        $region25: #{tpu_custom_call.1} parent=11 // pred_check
          %p419 = pneg %p211
        $region26: #{tpu_custom_call.1} parent=11 // pred_check_branch
          %421 = sbr.rel (%p419) target = $region28
        $region27: #{tpu_custom_call.1} parent=11 // pred_region
          %423 = vsyncadd [#allocation16], 0
          %s424 = sshll.u32 %s6, 4
          %s425 = int_to_ptr.hbm [resolvable:$true] %s424
          %s426 = sshll.u32 [#allocation15], 4
          %s427 = int_to_ptr.vmem [resolvable:$true] %s426
          %432 = dma.hbm_to_vmem [thread:$0]  %s425, 256, %s427, [#allocation16], 64, 64, 4
        $region28: #{tpu_custom_call.1} parent=11 // pred_fallthru
          _
        // Predicated region
        $region29: #{tpu_custom_call.1} parent=11 // pred_check
          %p433 = pneg %p232
        $region30: #{tpu_custom_call.1} parent=11 // pred_check_branch
          %435 = sbr.rel (%p433) target = $region32
        $region31: #{tpu_custom_call.1} parent=11 // pred_region
          _
        $region32: #{tpu_custom_call.1} parent=11 // pred_fallthru
          _
        // Predicated region
        $region33: #{tpu_custom_call.1} parent=11 // pred_check
          %p436 = pneg %p253
        $region34: #{tpu_custom_call.1} parent=11 // pred_check_branch
          %438 = sbr.rel (%p436) target = $region36
        $region35: #{tpu_custom_call.1} parent=11 // pred_region
          %440 = vsyncadd [#allocation16], 0
          %s441 = sshll.u32 %s8, 4
          %s442 = int_to_ptr.hbm [resolvable:$true] %s441
          %s443 = sshll.u32 [#allocation17], 4
          %s444 = int_to_ptr.vmem [resolvable:$true] %s443
          %449 = dma.hbm_to_vmem [thread:$0]  %s442, 256, %s444, [#allocation16], 64, 64, 4
        $region36: #{tpu_custom_call.1} parent=11 // pred_fallthru
          _
        // Predicated region
        $region37: #{tpu_custom_call.1} parent=11 // pred_check
          %p450 = pneg %p274
        $region38: #{tpu_custom_call.1} parent=11 // pred_check_branch
          %452 = sbr.rel (%p450) target = $region40
        $region39: #{tpu_custom_call.1} parent=11 // pred_region
          _
        $region40: #{tpu_custom_call.1} parent=11 // pred_fallthru
          _
        // Predicated region
        $region41: #{tpu_custom_call.1} parent=11 // pred_check
          %p453 = pneg %p321
        $region42: #{tpu_custom_call.1} parent=11 // pred_check_branch
          %455 = sbr.rel (%p453) target = $region44
        $region43: #{tpu_custom_call.1} parent=11 // pred_region
          _
        $region44: #{tpu_custom_call.1} parent=11 // pred_fallthru
          _
      $region12: #{tpu_custom_call.1} parent=5 // pred_fallthru
        _
      %p456 = scmp.lt.s32.totalorder %s37, 8
      // Predicated region
      $region45: #{tpu_custom_call.1} parent=5 // pred_check
        %p457 = pneg %p456
      $region46: #{tpu_custom_call.1} parent=5 // pred_check_branch
        %459 = sbr.rel (%p457) target = $region48
      $region47: #{tpu_custom_call.1} parent=5 // pred_region
        // Predicated region
        $region49: #{tpu_custom_call.1} parent=47 // pred_check
          %p460 = pneg %p69
        $region50: #{tpu_custom_call.1} parent=47 // pred_check_branch
          %462 = sbr.rel (%p460) target = $region52
        $region51: #{tpu_custom_call.1} parent=47 // pred_region
          %s463 = sand.u32 %s59, 1
          %s464 = scalar_lea.sflag [#allocation7], %s463
          %s465 = sand.u32 %s59, 1
          %s466 = smul.addr %s465, 8
          %s467 = scalar_lea.vmem [#allocation6], %s466
          %469 = vsyncadd %s464, 0
          %s470 = smul.addr %s44, 8
          %s471 = scalar_lea.hbm %s0, %s470
          %s473 = sshll.u32 %s471, 4
          %s474 = int_to_ptr.hbm [resolvable:$true] %s473
          %s475 = sshll.u32 %s467, 4
          %s476 = int_to_ptr.vmem [resolvable:$true] %s475
          %478 = dma.hbm_to_vmem [thread:$0]  %s474, 128, %s476, %s464
        $region52: #{tpu_custom_call.1} parent=47 // pred_fallthru
          _
        // Predicated region
        $region53: #{tpu_custom_call.1} parent=47 // pred_check
          %p479 = pneg %p95
        $region54: #{tpu_custom_call.1} parent=47 // pred_check_branch
          %481 = sbr.rel (%p479) target = $region56
        $region55: #{tpu_custom_call.1} parent=47 // pred_region
          %s482 = sand.u32 %s37, 1
          %s483 = scalar_lea.sflag [#allocation10], %s482
          %s484 = sand.u32 %s85, 1
          %s485 = smul.addr %s484, 8
          %s486 = scalar_lea.vmem [#allocation9], %s485
          %488 = vsyncadd %s483, 0
          %s489 = smul.addr %s44, 8
          %s490 = scalar_lea.hbm %s1, %s489
          %s492 = sshll.u32 %s490, 4
          %s493 = int_to_ptr.hbm [resolvable:$true] %s492
          %s494 = sshll.u32 %s486, 4
          %s495 = int_to_ptr.vmem [resolvable:$true] %s494
          %497 = dma.hbm_to_vmem [thread:$0]  %s493, 128, %s495, %s483
        $region56: #{tpu_custom_call.1} parent=47 // pred_fallthru
          _
        // Predicated region
        $region57: #{tpu_custom_call.1} parent=47 // pred_check
          %p498 = pneg %p121
        $region58: #{tpu_custom_call.1} parent=47 // pred_check_branch
          %500 = sbr.rel (%p498) target = $region60
        $region59: #{tpu_custom_call.1} parent=47 // pred_region
          %s501 = sand.u32 %s37, 1
          %s502 = scalar_lea.sflag [#allocation10], %s501
          %s503 = sand.u32 %s111, 1
          %s504 = smul.addr %s503, 8
          %s505 = scalar_lea.vmem [#allocation11], %s504
          %507 = vsyncadd %s502, 0
          %s508 = smul.addr %s44, 8
          %s509 = scalar_lea.hbm %s2, %s508
          %s511 = sshll.u32 %s509, 4
          %s512 = int_to_ptr.hbm [resolvable:$true] %s511
          %s513 = sshll.u32 %s505, 4
          %s514 = int_to_ptr.vmem [resolvable:$true] %s513
          %516 = dma.hbm_to_vmem [thread:$0]  %s512, 128, %s514, %s502
        $region60: #{tpu_custom_call.1} parent=47 // pred_fallthru
          _
        // Predicated region
        $region61: #{tpu_custom_call.1} parent=47 // pred_check
          %p517 = pneg %p294
        $region62: #{tpu_custom_call.1} parent=47 // pred_check_branch
          %519 = sbr.rel (%p517) target = $region64
        $region63: #{tpu_custom_call.1} parent=47 // pred_region
          %s520 = sand.u32 %s284, 1
          %s521 = scalar_lea.sflag [#allocation19], %s520
          %s522 = sand.u32 %s284, 1
          %s523 = smul.addr %s522, 4
          %s524 = scalar_lea.vmem [#allocation18], %s523
          %526 = vsyncadd %s521, 0
          %s527 = smul.addr %s45, 4
          %s528 = scalar_lea.hbm %s10, %s527
          %s530 = sshll.u32 %s528, 4
          %s531 = int_to_ptr.hbm [resolvable:$true] %s530
          %s532 = sshll.u32 %s524, 4
          %s533 = int_to_ptr.vmem [resolvable:$true] %s532
          %535 = dma.hbm_to_vmem [thread:$0]  %s531, 64, %s533, %s521
        $region64: #{tpu_custom_call.1} parent=47 // pred_fallthru
          _
      $region48: #{tpu_custom_call.1} parent=5 // pred_fallthru
        _
      %p536 = scmp.le.s32.totalorder 1, %s37
      %p537 = scmp.lt.s32.totalorder %s37, 9
      %p538 = pnand %p536, %p537
      %p539 = pneg %p538
      // Predicated region
      $region65: #{tpu_custom_call.1} parent=5 // pred_check
        _
      $region66: #{tpu_custom_call.1} parent=5 // pred_check_branch
        %541 = sbr.rel (%p538) target = $region68
      $region67: #{tpu_custom_call.1} parent=5 // pred_region
        %s542 = ssub.s32 %s37, 1
        %s543 = sand.u32 %s62, 1
        %s544 = scalar_lea.sflag [#allocation7], %s543
        %s545 = sand.u32 %s62, 1
        %s546 = smul.addr %s545, 8
        %s547 = scalar_lea.vmem [#allocation6], %s546
        // Predicated region
        $region69: #{tpu_custom_call.1} parent=67 // pred_check
          %p548 = pneg %p75
        $region70: #{tpu_custom_call.1} parent=67 // pred_check_branch
          %550 = sbr.rel (%p548) target = $region72
        $region71: #{tpu_custom_call.1} parent=67 // pred_region
          %552 = dma.done %s544, 128
        $region72: #{tpu_custom_call.1} parent=67 // pred_fallthru
          _
        %s553 = sand.u32 %s42, 1
        %s554 = scalar_lea.sflag [#allocation10], %s553
        %s555 = sand.u32 %s88, 1
        %s556 = smul.addr %s555, 8
        %s557 = scalar_lea.vmem [#allocation9], %s556
        // Predicated region
        $region73: #{tpu_custom_call.1} parent=67 // pred_check
          %p558 = pneg %p101
        $region74: #{tpu_custom_call.1} parent=67 // pred_check_branch
          %560 = sbr.rel (%p558) target = $region76
        $region75: #{tpu_custom_call.1} parent=67 // pred_region
          %562 = dma.done %s554, 128
        $region76: #{tpu_custom_call.1} parent=67 // pred_fallthru
          _
        %s563 = sand.u32 %s42, 1
        %s564 = scalar_lea.sflag [#allocation10], %s563
        %s565 = sand.u32 %s114, 1
        %s566 = smul.addr %s565, 8
        %s567 = scalar_lea.vmem [#allocation11], %s566
        // Predicated region
        $region77: #{tpu_custom_call.1} parent=67 // pred_check
          %p568 = pneg %p127
        $region78: #{tpu_custom_call.1} parent=67 // pred_check_branch
          %570 = sbr.rel (%p568) target = $region80
        $region79: #{tpu_custom_call.1} parent=67 // pred_region
          %572 = dma.done %s564, 128
        $region80: #{tpu_custom_call.1} parent=67 // pred_fallthru
          _
        // Predicated region
        $region81: #{tpu_custom_call.1} parent=67 // pred_check
          %p573 = pneg %p148
        $region82: #{tpu_custom_call.1} parent=67 // pred_check_branch
          %575 = sbr.rel (%p573) target = $region84
        $region83: #{tpu_custom_call.1} parent=67 // pred_region
          %577 = dma.done [#allocation13], 128
        $region84: #{tpu_custom_call.1} parent=67 // pred_fallthru
          _
        // Predicated region
        $region85: #{tpu_custom_call.1} parent=67 // pred_check
          %p578 = pneg %p169
        $region86: #{tpu_custom_call.1} parent=67 // pred_check_branch
          %580 = sbr.rel (%p578) target = $region88
        $region87: #{tpu_custom_call.1} parent=67 // pred_region
          %582 = dma.done [#allocation13], 256
        $region88: #{tpu_custom_call.1} parent=67 // pred_fallthru
          _
        // Predicated region
        $region89: #{tpu_custom_call.1} parent=67 // pred_check
          %p583 = pneg %p211
        $region90: #{tpu_custom_call.1} parent=67 // pred_check_branch
          %585 = sbr.rel (%p583) target = $region92
        $region91: #{tpu_custom_call.1} parent=67 // pred_region
          %587 = dma.done [#allocation16], 256
        $region92: #{tpu_custom_call.1} parent=67 // pred_fallthru
          _
        // Predicated region
        $region93: #{tpu_custom_call.1} parent=67 // pred_check
          %p588 = pneg %p253
        $region94: #{tpu_custom_call.1} parent=67 // pred_check_branch
          %590 = sbr.rel (%p588) target = $region96
        $region95: #{tpu_custom_call.1} parent=67 // pred_region
          %592 = dma.done [#allocation16], 256
        $region96: #{tpu_custom_call.1} parent=67 // pred_fallthru
          _
        %s593 = sand.u32 %s287, 1
        %s594 = scalar_lea.sflag [#allocation19], %s593
        %s595 = sand.u32 %s287, 1
        %s596 = smul.addr %s595, 4
        %s597 = scalar_lea.vmem [#allocation18], %s596
        // Predicated region
        $region97: #{tpu_custom_call.1} parent=67 // pred_check
          %p598 = pneg %p300
        $region98: #{tpu_custom_call.1} parent=67 // pred_check_branch
          %600 = sbr.rel (%p598) target = $region100
        $region99: #{tpu_custom_call.1} parent=67 // pred_region
          %602 = dma.done %s594, 64
        $region100: #{tpu_custom_call.1} parent=67 // pred_fallthru
          _
        %s603 = sand.u32 %s62, 1
        %s604 = scalar_lea.sflag [#allocation7], %s603
        %s605 = sand.u32 %s62, 1
        %s606 = smul.addr %s605, 8
        %s607 = scalar_lea.vmem [#allocation6], %s606
        %p608 = pneg %p75
        %p609 = pneg %p72
        %s610 = sand.u32 %s42, 1
        %s611 = scalar_lea.sflag [#allocation10], %s610
        %s612 = sand.u32 %s88, 1
        %s613 = smul.addr %s612, 8
        %s614 = scalar_lea.vmem [#allocation9], %s613
        %p615 = pneg %p101
        %p616 = pneg %p98
        %s617 = sand.u32 %s42, 1
        %s618 = scalar_lea.sflag [#allocation10], %s617
        %s619 = sand.u32 %s114, 1
        %s620 = smul.addr %s619, 8
        %s621 = scalar_lea.vmem [#allocation11], %s620
        %p622 = pneg %p127
        %p623 = pneg %p124
        %p624 = pneg %p148
        %p625 = pneg %p145
        %p626 = pneg %p169
        %p627 = pneg %p166
        %p628 = pneg %p190
        %p629 = pneg %p187
        %p630 = pneg %p211
        %p631 = pneg %p208
        %p632 = pneg %p232
        %p633 = pneg %p229
        %p634 = pneg %p253
        %p635 = pneg %p250
        %p636 = pneg %p274
        %p637 = pneg %p271
        %s638 = sand.u32 %s287, 1
        %s639 = scalar_lea.sflag [#allocation19], %s638
        %s640 = sand.u32 %s287, 1
        %s641 = smul.addr %s640, 4
        %s642 = scalar_lea.vmem [#allocation18], %s641
        %p643 = pneg %p300
        %p644 = pneg %p297
        %p645 = pneg %p321
        %p646 = pneg %p318
        %p647 = pneg %p347
        %p648 = pneg %p344
        %s649 = sand.u32 %s334, 1
        %s650 = scalar_lea.sflag [#allocation8], %s649
        %s651 = sand.u32 %s334, 1
        %s652 = smul.addr %s651, 8
        %s653 = scalar_lea.vmem [#allocation20], %s652
        %p654 = pneg %p375
        %p655 = pneg %p372
        %s656 = sand.u32 %s362, 1
        %s657 = scalar_lea.sflag [#allocation22], %s656
        %s658 = sand.u32 %s362, 1
        %s659 = smul.addr %s658, 8
        %s660 = scalar_lea.vmem [#allocation21], %s659
        %p662 = scmp.eq.s32.totalorder %s47, 0
        // Predicated region
        $region101: #{tpu_custom_call.1} parent=67 // pred_check
          %p663 = pneg %p662
        $region102: #{tpu_custom_call.1} parent=67 // pred_check_branch
          %665 = sbr.rel (%p663) target = $region104
        $region103: #{tpu_custom_call.1} parent=67 // pred_region
          %v666 = vld [vmem:[%s547] sm:$0xff]
          %v667 = vpack.c.bf16 %v666, %v666
          %v668 = vld [vmem:[%s557] sm:$0xff]
          %v669 = vpack.c.bf16 %v668, %v668
          %v670 = vld [vmem:[%s567] sm:$0xff]
          %v671 = vpack.c.bf16 %v670, %v670
          %v672 = vld [vmem:[#allocation14] sm:$0xf]
          %v673 = vld [vmem:[#allocation14 + $0x4] sm:$0xf]
          %v674 = vld [vmem:[#allocation14 + $0x8] sm:$0xf]
          %v675 = vld [vmem:[#allocation14 + $0xc] sm:$0xf]
          %v676 = vld [vmem:[%s5] sm:$0x1]
          %v678 = vperm.slane %v676, 0
          %v684 = vunpack.c.l.b16 %v672
          %v685 = vunpack.c.l.b16 %v673
          %v686 = vunpack.c.l.b16 %v674
          %v687 = vunpack.c.l.b16 %v675
          %v688 = vpack.c.b16 %v685, %v684
          %v689 = vpack.c.b16 %v687, %v686
          %vm692 = vcmask 261120
          %v694 = vsel %vm692, %v667, 0
          %696 = vmatpush.bf16.msra.mxu0 0
          %697 = vmatpush.bf16.msra.mxu0 0
          %698 = vmatpush.bf16.msra.mxu0 0
          %699 = vmatpush.bf16.msra.mxu0 0
          %700 = vmatpush.bf16.msra.mxu0 0
          %701 = vmatpush.bf16.msra.mxu0 0
          %702 = vmatpush.bf16.msra.mxu0 %v689
          %703 = vmatpush.bf16.msra.mxu0 %v688
          %704 = vmatmul.bf16.gmra.mxu0 %v694
          %v705 = vpop.f32.mrf.mxu0
          %v706 = vadd.f32 %v678, %v705
          %v707 = vpop.f32.mrf.mxu0
          %708 = vdwg.mxu0
          %v709 = vld [vmem:[#allocation15] sm:$0xf]
          %v710 = vld [vmem:[#allocation15 + $0x4] sm:$0xf]
          %v711 = vld [vmem:[#allocation15 + $0x8] sm:$0xf]
          %v712 = vld [vmem:[#allocation15 + $0xc] sm:$0xf]
          %v713 = vld [vmem:[%s7] sm:$0x1]
          %v715 = vperm.slane %v713, 0
          %v721 = vunpack.c.l.b16 %v709
          %v722 = vunpack.c.l.b16 %v710
          %v723 = vunpack.c.l.b16 %v711
          %v724 = vunpack.c.l.b16 %v712
          %v725 = vpack.c.b16 %v722, %v721
          %v726 = vpack.c.b16 %v724, %v723
          %v730 = vsel %vm692, %v669, 0
          %732 = vmatpush.bf16.msra.mxu0 0
          %733 = vmatpush.bf16.msra.mxu0 0
          %734 = vmatpush.bf16.msra.mxu0 0
          %735 = vmatpush.bf16.msra.mxu0 0
          %736 = vmatpush.bf16.msra.mxu0 0
          %737 = vmatpush.bf16.msra.mxu0 0
          %738 = vmatpush.bf16.msra.mxu0 %v726
          %739 = vmatpush.bf16.msra.mxu0 %v725
          %740 = vmatmul.bf16.gmra.mxu0 %v730
          %v741 = vpop.f32.mrf.mxu0
          %v742 = vadd.f32 %v715, %v741
          %v743 = vpop.f32.mrf.mxu0
          %744 = vdwg.mxu0
          %v745 = vld [vmem:[#allocation17] sm:$0xf]
          %v746 = vld [vmem:[#allocation17 + $0x4] sm:$0xf]
          %v747 = vld [vmem:[#allocation17 + $0x8] sm:$0xf]
          %v748 = vld [vmem:[#allocation17 + $0xc] sm:$0xf]
          %v749 = vld [vmem:[%s9] sm:$0x1]
          %v751 = vperm.slane %v749, 0
          %v757 = vunpack.c.l.b16 %v745
          %v758 = vunpack.c.l.b16 %v746
          %v759 = vunpack.c.l.b16 %v747
          %v760 = vunpack.c.l.b16 %v748
          %v761 = vpack.c.b16 %v758, %v757
          %v762 = vpack.c.b16 %v760, %v759
          %v766 = vsel %vm692, %v671, 0
          %768 = vmatpush.bf16.msra.mxu0 0
          %769 = vmatpush.bf16.msra.mxu0 0
          %770 = vmatpush.bf16.msra.mxu0 0
          %771 = vmatpush.bf16.msra.mxu0 0
          %772 = vmatpush.bf16.msra.mxu0 0
          %773 = vmatpush.bf16.msra.mxu0 0
          %774 = vmatpush.bf16.msra.mxu0 %v762
          %775 = vmatpush.bf16.msra.mxu0 %v761
          %776 = vmatmul.bf16.gmra.mxu0 %v766
          %v777 = vpop.f32.mrf.mxu0
          %v778 = vadd.f32 %v751, %v777
          %v779 = vpop.f32.mrf.mxu0
          %780 = vdwg.mxu0
          %v781 = vmul.f32 %v706, 0.35355338
          %v782 = vpack.c.bf16 %v781, %v781
          %vm783 = vcmask 60416
          %784 = vst.msk [vmem:[#allocation2] sm:$0xf] %vm783, %v782
          %v785 = vpack.c.bf16 %v742, %v742
          %786 = vst.msk [vmem:[#allocation3] sm:$0xf] %vm783, %v785
          %v787 = vpack.c.bf16 %v778, %v778
          %788 = vst.msk [vmem:[#allocation4] sm:$0xf] %vm783, %v787
          %790 = vrot.lane.b32.xlu0 %v782, 120
          %v791 = vpop.permute.xlu0 %790
          %s793 = scalar_lea.vmem [#allocation2], 4
          %794 = vst.msk [vmem:[%s793] sm:$0xf] %vm783, %v791
          %796 = vrot.lane.b32.xlu0 %v785, 120
          %v797 = vpop.permute.xlu0 %796
          %s799 = scalar_lea.vmem [#allocation3], 4
          %800 = vst.msk [vmem:[%s799] sm:$0xf] %vm783, %v797
          %802 = vrot.lane.b32.xlu0 %v787, 120
          %v803 = vpop.permute.xlu0 %802
          %s805 = scalar_lea.vmem [#allocation4], 4
          %806 = vst.msk [vmem:[%s805] sm:$0xf] %vm783, %v803
          %807 = vrot.lane.b32.xlu0 %v782, 112
          %v808 = vpop.permute.xlu0 %807
          %s810 = scalar_lea.vmem [#allocation2], 8
          %811 = vst.msk [vmem:[%s810] sm:$0xf] %vm783, %v808
          %812 = vrot.lane.b32.xlu0 %v785, 112
          %v813 = vpop.permute.xlu0 %812
          %s815 = scalar_lea.vmem [#allocation3], 8
          %816 = vst.msk [vmem:[%s815] sm:$0xf] %vm783, %v813
          %817 = vrot.lane.b32.xlu0 %v787, 112
          %v818 = vpop.permute.xlu0 %817
          %s820 = scalar_lea.vmem [#allocation4], 8
          %821 = vst.msk [vmem:[%s820] sm:$0xf] %vm783, %v818
          %822 = vrot.lane.b32.xlu0 %v782, 104
          %v823 = vpop.permute.xlu0 %822
          %s825 = scalar_lea.vmem [#allocation2], 12
          %826 = vst.msk [vmem:[%s825] sm:$0xf] %vm783, %v823
          %827 = vrot.lane.b32.xlu0 %v785, 104
          %v828 = vpop.permute.xlu0 %827
          %s830 = scalar_lea.vmem [#allocation3], 12
          %831 = vst.msk [vmem:[%s830] sm:$0xf] %vm783, %v828
          %832 = vrot.lane.b32.xlu0 %v787, 104
          %v833 = vpop.permute.xlu0 %832
          %s835 = scalar_lea.vmem [#allocation4], 12
          %836 = vst.msk [vmem:[%s835] sm:$0xf] %vm783, %v833
          %837 = vst.msk [vmem:[#allocation5] sm:$0xff] %vm692, 0.0
        $region104: #{tpu_custom_call.1} parent=67 // pred_fallthru
          _
        %s838 = smul.addr %s47, 4
        %s839 = scalar_lea.vmem [#allocation2], %s838
        %v840 = vld [vmem:[%s839] sm:$0xf]
        %s841 = smul.addr %s47, 4
        %s842 = scalar_lea.vmem [#allocation3], %s841
        %v843 = vld [vmem:[%s842] sm:$0xf]
        %s844 = smul.addr %s47, 4
        %s845 = scalar_lea.vmem [#allocation4], %s844
        %v846 = vld [vmem:[%s845] sm:$0xf]
        %v847 = vld [vmem:[#allocation12] sm:$0xff]
        %vm848 = vcmask 64512
        %v850 = vsel %vm848, %v840, 0
        %v853 = vsel %vm848, %v843, 0
        %855 = vmatpush.bf16.xpose.msra.mxu0 0
        %856 = vmatpush.bf16.xpose.msra.mxu0 0
        %857 = vmatpush.bf16.xpose.msra.mxu0 0
        %858 = vmatpush.bf16.xpose.msra.mxu0 0
        %859 = vmatpush.bf16.xpose.msra.mxu0 0
        %860 = vmatpush.bf16.xpose.msra.mxu0 0
        %861 = vmatpush.bf16.xpose.msra.mxu0 0
        %862 = vmatpush.bf16.xpose.msra.mxu0 %v853
        %863 = vmatmul.bf16.gmra.mxu0 %v850
        %v864 = vpop.f32.mrf.mxu0
        %v865 = vadd.f32 %v847, %v864
        %v866 = vpop.f32.mrf.mxu0
        %867 = vdwg.mxu0
        %v868 = vsel %vm848, %v865, -inf
        %869 = vmax.xlane.f32.xlu0 %v868
        %v870 = vpop.xlane.xlu0 %869
        %v871 = vsub.f32 %v865, %v870
        %v872 = vmul.f32 %v871, 1.442695
        %v873 = vpow.pop %v872
        %v874 = vsel %vm848, %v873, 0.0
        %875 = vadd.xlane.f32.xlu0 %v874
        %v876 = vpop.xlane.xlu0 %875
        %v877 = vrcp.pop %v876
        %v878 = vmul.f32 %v873, %v877
        %879 = vst.msk [vmem:[%s660] sm:$0xff] %vm848, %v878
        %v880 = vpack.c.bf16 %v878, %v878
        %v882 = vsel %vm848, %v880, 0
        %vm884 = vcmask 1043456
        %v886 = vsel %vm884, %v846, 0
        %888 = vmatpush.bf16.msra.mxu0 0
        %889 = vmatpush.bf16.msra.mxu0 0
        %890 = vmatpush.bf16.msra.mxu0 0
        %891 = vmatpush.bf16.msra.mxu0 0
        %892 = vmatpush.bf16.msra.mxu0 0
        %893 = vmatpush.bf16.msra.mxu0 0
        %894 = vmatpush.bf16.msra.mxu0 0
        %895 = vmatpush.bf16.msra.mxu0 %v886
        %896 = vmatmul.bf16.gmra.mxu0 %v882
        %v897 = vpop.f32.mrf.mxu0
        %v898 = vadd.f32 0.0, %v897
        %v899 = vpop.f32.mrf.mxu0
        %900 = vdwg.mxu0
        %v901 = vld [vmem:[#allocation5] sm:$0xff]
        %v902 = vpack.c.bf16 %v898, %v898
        %v903 = vld [vmem:[%s597] sm:$0xf]
        %v905 = vsel %vm848, %v902, 0
        %v908 = vsel %vm884, %v903, 0
        %910 = vmatpush.bf16.msra.mxu0 0
        %911 = vmatpush.bf16.msra.mxu0 0
        %912 = vmatpush.bf16.msra.mxu0 0
        %913 = vmatpush.bf16.msra.mxu0 0
        %914 = vmatpush.bf16.msra.mxu0 0
        %915 = vmatpush.bf16.msra.mxu0 0
        %916 = vmatpush.bf16.msra.mxu0 0
        %917 = vmatpush.bf16.msra.mxu0 %v908
        %918 = vmatmul.bf16.gmra.mxu0 %v905
        %v919 = vpop.f32.mrf.mxu0
        %v920 = vadd.f32 0.0, %v919
        %v921 = vpop.f32.mrf.mxu0
        %922 = vdwg.mxu0
        %v923 = vadd.f32 %v901, %v920
        %vm924 = vcmask 261120
        %925 = vst.msk [vmem:[#allocation5] sm:$0xff] %vm924, %v923
        %p926 = scmp.eq.s32.totalorder %s47, 3
        // Predicated region
        $region105: #{tpu_custom_call.1} parent=67 // pred_check
          %p927 = pneg %p926
        $region106: #{tpu_custom_call.1} parent=67 // pred_check_branch
          %929 = sbr.rel (%p927) target = $region108
        $region107: #{tpu_custom_call.1} parent=67 // pred_region
          %v930 = vld [vmem:[#allocation5] sm:$0xff]
          %v931 = vld [vmem:[%s11] sm:$0x1]
          %v933 = vperm.slane %v931, 0
          %v935 = vadd.f32 %v930, %v933
          %936 = vst.msk [vmem:[%s653] sm:$0xff] %vm924, %v935
        $region108: #{tpu_custom_call.1} parent=67 // pred_fallthru
          _
        %s937 = sand.u32 %s334, 1
        %s938 = scalar_lea.sflag [#allocation8], %s937
        %s939 = sand.u32 %s334, 1
        %s940 = smul.addr %s939, 8
        %s941 = scalar_lea.vmem [#allocation20], %s940
        %s942 = sand.u32 %s362, 1
        %s943 = scalar_lea.sflag [#allocation22], %s942
        %s944 = sand.u32 %s362, 1
        %s945 = smul.addr %s944, 8
        %s946 = scalar_lea.vmem [#allocation21], %s945
        // Predicated region
        $region109: #{tpu_custom_call.1} parent=67 // pred_check
          %p947 = pneg %p344
        $region110: #{tpu_custom_call.1} parent=67 // pred_check_branch
          %949 = sbr.rel (%p947) target = $region112
        $region111: #{tpu_custom_call.1} parent=67 // pred_region
          %951 = vsyncadd %s938, 0
          %s952 = smul.addr %s46, 8
          %s953 = scalar_lea.hbm %s12, %s952
          %s955 = sshll.u32 %s941, 4
          %s956 = int_to_ptr.vmem [resolvable:$true] %s955
          %s957 = sshll.u32 %s953, 4
          %s958 = int_to_ptr.hbm [resolvable:$true] %s957
          %960 = dma.vmem_to_hbm [thread:$0]  %s956, 128, %s958, %s938
        $region112: #{tpu_custom_call.1} parent=67 // pred_fallthru
          _
        // Predicated region
        $region113: #{tpu_custom_call.1} parent=67 // pred_check
          %p961 = pneg %p372
        $region114: #{tpu_custom_call.1} parent=67 // pred_check_branch
          %963 = sbr.rel (%p961) target = $region116
        $region115: #{tpu_custom_call.1} parent=67 // pred_region
          %965 = vsyncadd %s943, 0
          %s966 = smul.addr %s46, 4
          %s967 = sadd.s32 %s47, %s966
          %s968 = smul.addr %s967, 8
          %s969 = scalar_lea.hbm %s13, %s968
          %s971 = sshll.u32 %s946, 4
          %s972 = int_to_ptr.vmem [resolvable:$true] %s971
          %s973 = sshll.u32 %s969, 4
          %s974 = int_to_ptr.hbm [resolvable:$true] %s973
          %976 = dma.vmem_to_hbm [thread:$0]  %s972, 128, %s974, %s943
        $region116: #{tpu_custom_call.1} parent=67 // pred_fallthru
          _
      $region68: #{tpu_custom_call.1} parent=5 // pred_fallthru
        _
      %p977 = scmp.le.s32.totalorder 2, %s37
      // Predicated region
      $region117: #{tpu_custom_call.1} parent=5 // pred_check
        %p978 = pneg %p977
      $region118: #{tpu_custom_call.1} parent=5 // pred_check_branch
        %980 = sbr.rel (%p978) target = $region120
      $region119: #{tpu_custom_call.1} parent=5 // pred_region
        %s981 = ssub.s32 %s37, 2
        // Predicated region
        $region121: #{tpu_custom_call.1} parent=119 // pred_check
          %p982 = pneg %p350
        $region122: #{tpu_custom_call.1} parent=119 // pred_check_branch
          %984 = sbr.rel (%p982) target = $region124
        $region123: #{tpu_custom_call.1} parent=119 // pred_region
          %s985 = sand.u32 %s335, 1
          %s986 = scalar_lea.sflag [#allocation8], %s985
          %s987 = sand.u32 %s335, 1
          %s988 = smul.addr %s987, 8
          %s989 = scalar_lea.vmem [#allocation20], %s988
          %991 = dma.done %s986, 128
        $region124: #{tpu_custom_call.1} parent=119 // pred_fallthru
          _
        // Predicated region
        $region125: #{tpu_custom_call.1} parent=119 // pred_check
          %p992 = pneg %p378
        $region126: #{tpu_custom_call.1} parent=119 // pred_check_branch
          %994 = sbr.rel (%p992) target = $region128
        $region127: #{tpu_custom_call.1} parent=119 // pred_region
          %s995 = sand.u32 %s363, 1
          %s996 = scalar_lea.sflag [#allocation22], %s995
          %s997 = sand.u32 %s363, 1
          %s998 = smul.addr %s997, 8
          %s999 = scalar_lea.vmem [#allocation21], %s998
          %1001 = dma.done %s996, 128
        $region128: #{tpu_custom_call.1} parent=119 // pred_fallthru
          _
      $region120: #{tpu_custom_call.1} parent=5 // pred_fallthru
        _
    $region6: #{tpu_custom_call.1} parent=1 // loop_footer
      %s41 = sadd.s32 1, %s37
    $region7: #{tpu_custom_call.1} parent=1 // loop_footer_branch
      %36 = sbr.rel target = $region3
    $region8: #{tpu_custom_call.1} parent=1 // loop_exit
      _
    %1002 = vsyncpa [#allocation7], 1
    %s1003 = scalar_lea.sflag [#allocation7], 1
    %1004 = vsyncpa %s1003, 1
    %1005 = vsyncpa [#allocation10], 1
    %s1006 = scalar_lea.sflag [#allocation10], 1
    %1007 = vsyncpa %s1006, 1
    %1008 = vsyncpa [#allocation13], 1
    %1009 = vsyncpa [#allocation16], 1
    %1010 = vsyncpa [#allocation19], 1
    %s1011 = scalar_lea.sflag [#allocation19], 1
    %1012 = vsyncpa %s1011, 1
    %1013 = vsyncpa [#allocation8], 1
    %s1014 = scalar_lea.sflag [#allocation8], 1
    %1015 = vsyncpa %s1014, 1
    %1016 = vsyncpa [#allocation22], 1
    %s1017 = scalar_lea.sflag [#allocation22], 1
    %1018 = vsyncpa %s1017, 1

</llo_original>
